<compile_context>
chip_gen: v5e
topology: v5e:2x2
jax: 0.10.0
libtpu: 0.0.40
codegen_flags: <defaults>
</compile_context>

<pallas_src>
import math
import functools

import jax
import jax.numpy as jnp
from jax.experimental import pallas as pl
from jax.experimental.pallas import tpu as pltpu


# Matmul input dtype.  jnp.float32 matches PyTorch numerics; set to
# jnp.bfloat16 on v6e/v7x for ~2x MXU throughput / HBM traffic.
MATMUL_DTYPE = jnp.float32


def _mm(a, b):
    return jnp.dot(a.astype(MATMUL_DTYPE), b.astype(MATMUL_DTYPE),
                   preferred_element_type=jnp.float32)


def _layernorm(x, a, b, eps):
    # torch LayerNorm as written in the reference module: unbiased std (N-1),
    # eps added to std (not var).  Single pass over x: E[x] and E[x^2].
    d = x.shape[-1]
    mean = jnp.mean(x, axis=-1, keepdims=True)
    meansq = jnp.mean(x * x, axis=-1, keepdims=True)
    var = (meansq - mean * mean) * (d / (d - 1.0))
    std = jnp.sqrt(jnp.maximum(var, 0.0))
    return a * ((x - mean) / (std + eps)) + b


# ----------------------------- Pallas kernel -------------------------------

def _encoder_kernel(x_ref,
                    ln1a_ref, ln1b_ref,
                    wq_ref, bq_ref, wk_ref, bk_ref, wv_ref, bv_ref,
                    wo_ref, bo_ref,
                    ln2a_ref, ln2b_ref,
                    w1_ref, b1_ref, w2_ref, b2_ref,
                    na_ref, nb_ref,
                    o_ref,
                    res_ref,
                    *, num_heads, eps):
    """One (batch element, layer) grid step of the full Encoder.

    The residual stream is carried in VMEM scratch `res_ref` across the
    "arbitrary" layer grid axis.  Per-layer weight blocks are selected by the
    layer grid index and double-buffered by the Pallas pipeline.
    """
    layer = pl.program_id(1)
    n_layers = pl.num_programs(1)

    @pl.when(layer == 0)
    def _():
        res_ref[...] = x_ref[0]

    x = res_ref[...]                                   # [S, D]
    d = x.shape[-1]
    dk = d // num_heads
    scale = 1.0 / math.sqrt(dk)

    # ---- sublayer 1: x + OutProj(MHA(LayerNorm(x))) ----
    xn = _layernorm(x, ln1a_ref[0], ln1b_ref[0], eps)
    q = _mm(xn, wq_ref[0]) + bq_ref[0]                 # [S, D]
    k = _mm(xn, wk_ref[0]) + bk_ref[0]
    v = _mm(xn, wv_ref[0]) + bv_ref[0]

    # Per-head attention on static lane slices of the [S, D] tiles.
    # TODO(synk): for long sequences tile the KV axis (flash-style online
    # softmax with m/l/acc scratch) instead of a full [S, S] scores block.
    heads = []
    for h in range(num_heads):                         # static, unrolled
        sl = slice(h * dk, (h + 1) * dk)
        qh = q[:, sl].astype(MATMUL_DTYPE)
        kh = k[:, sl].astype(MATMUL_DTYPE)
        vh = v[:, sl].astype(MATMUL_DTYPE)
        # Contract last dims of q and k directly (no in-kernel transpose).
        scores = jax.lax.dot_general(
            qh, kh, (((1,), (1,)), ((), ())),
            preferred_element_type=jnp.float32) * scale      # [S, S]
        m = jnp.max(scores, axis=-1, keepdims=True)
        p = jnp.exp(scores - m)
        p = p * pl.reciprocal(jnp.sum(p, axis=-1, keepdims=True), approx=True)
        heads.append(_mm(p, vh))                              # [S, Dk]
    att = jnp.concatenate(heads, axis=-1)                     # [S, D]
    x = x + _mm(att, wo_ref[0]) + bo_ref[0]

    # ---- sublayer 2: x + W2(relu(W1(LayerNorm(x)))) ----
    xn = _layernorm(x, ln2a_ref[0], ln2b_ref[0], eps)
    h1 = jnp.maximum(_mm(xn, w1_ref[0]) + b1_ref[0], 0.0)     # [S, d_ff]
    x = x + _mm(h1, w2_ref[0]) + b2_ref[0]

    # Carry the residual stream to the next layer step (VMEM only).
    res_ref[...] = x

    # Final Encoder.norm written to HBM exactly once per batch element.
    @pl.when(layer == n_layers - 1)
    def _():
        o_ref[0] = _layernorm(x, na_ref[...], nb_ref[...], eps)


# ----------------------------- wrapper --------------------------------------

def _vmem_limit_bytes(S, D, d_ff):
    # Double-buffered per-layer weight blocks + resident activations + headroom.
    wbytes = (4 * D * D + 2 * D * d_ff + 8 * D + d_ff) * 4
    abytes = (10 * S * D + 2 * S * d_ff + 2 * S * S) * 4
    est = 2 * wbytes + abytes + (4 << 20)
    # Clamp to fit v7x's 64 MiB physical VMEM while allowing bigger models on
    # v5e/v6e than the 32 MiB scoped default.
    return int(min(max(est, 32 << 20), 64 << 20))


def encoder_forward(x, params, num_heads, eps=1e-6):
    """Encoder.forward: N pre-norm encoder layers + final LayerNorm, 1 pallas_call."""
    B, S, D = x.shape
    L, _, d_ff = params["w1"].shape

    def lspec(arr):
        nd = arr.ndim
        return pl.BlockSpec((1,) + arr.shape[1:],
                            lambda b, l, _nd=nd: (l,) + (0,) * (_nd - 1))

    def fullspec(arr):
        nd = arr.ndim
        return pl.BlockSpec(arr.shape, lambda b, l, _nd=nd: (0,) * _nd)

    norm_a = params["norm_a"].reshape(1, D)
    norm_b = params["norm_b"].reshape(1, D)

    layer_args = [
        params["ln1_a"], params["ln1_b"],
        params["wq"], params["bq"], params["wk"], params["bk"],
        params["wv"], params["bv"], params["wo"], params["bo"],
        params["ln2_a"], params["ln2_b"],
        params["w1"], params["b1"], params["w2"], params["b2"],
    ]

    in_specs = ([pl.BlockSpec((1, S, D), lambda b, l: (b, 0, 0))]
                + [lspec(a) for a in layer_args]
                + [fullspec(norm_a), fullspec(norm_b)])

    return pl.pallas_call(
        functools.partial(_encoder_kernel, num_heads=num_heads, eps=eps),
        out_shape=jax.ShapeDtypeStruct((B, S, D), jnp.float32),
        grid=(B, L),
        in_specs=in_specs,
        out_specs=pl.BlockSpec((1, S, D), lambda b, l: (b, 0, 0)),
        scratch_shapes=[pltpu.VMEM((S, D), jnp.float32)],
        compiler_params=pltpu.CompilerParams(
            dimension_semantics=("parallel", "arbitrary"),
            vmem_limit_bytes=_vmem_limit_bytes(S, D, d_ff),
        ),
    )(x, *layer_args, norm_a, norm_b)


# ----------------------------- parameter init -------------------------------

def init_params(key, n_layers, d_model, d_ff):
    # NOTE: PyTorch's clones() deep-copies one layer (identical init weights);
    # here we just build deterministic per-layer weights stacked on a leading
    # layer axis so the kernel can index them with the layer grid position.
    keys = jax.random.split(key, 6)

    def w(k, shape, scale=0.02):
        return scale * jax.random.normal(k, shape, dtype=jnp.float32)

    L, D, F = n_layers, d_model, d_ff
    return dict(
        ln1_a=jnp.ones((L, 1, D), jnp.float32),
        ln1_b=jnp.zeros((L, 1, D), jnp.float32),
        wq=w(keys[0], (L, D, D)), bq=jnp.zeros((L, 1, D), jnp.float32),
        wk=w(keys[1], (L, D, D)), bk=jnp.zeros((L, 1, D), jnp.float32),
        wv=w(keys[2], (L, D, D)), bv=jnp.zeros((L, 1, D), jnp.float32),
        wo=w(keys[3], (L, D, D)), bo=jnp.zeros((L, 1, D), jnp.float32),
        ln2_a=jnp.ones((L, 1, D), jnp.float32),
        ln2_b=jnp.zeros((L, 1, D), jnp.float32),
        w1=w(keys[4], (L, D, F)), b1=jnp.zeros((L, 1, F), jnp.float32),
        w2=w(keys[5], (L, F, D)), b2=jnp.zeros((L, 1, D), jnp.float32),
        norm_a=jnp.ones((D,), jnp.float32),
        norm_b=jnp.zeros((D,), jnp.float32),
    )


# ----------------------------- main ------------------------------------------

if __name__ == "__main__":
    B, S, D, H, D_FF, N_LAYERS = 2, 8, 32, 4, 64, 2

    key = jax.random.PRNGKey(0)
    kx, kp = jax.random.split(key)
    x = jax.random.normal(kx, (B, S, D), dtype=jnp.float32)
    params = init_params(kp, N_LAYERS, D, D_FF)

    fwd = jax.jit(functools.partial(encoder_forward, num_heads=H))
    out = jax.block_until_ready(fwd(x, params))

    assert out.shape == (B, S, D)
    assert bool(jnp.all(jnp.isfinite(out)))
    print("KERNEL_OK")
</pallas_src>

<mosaic_0001>
module attributes {stable_mosaic.version = 11 : i64} {
  func.func @_encoder_kernel(%arg0: i32, %arg1: i32, %arg2: memref<1x8x32xf32, #tpu.memory_space<vmem>>, %arg3: memref<1x1x32xf32, #tpu.memory_space<vmem>>, %arg4: memref<1x1x32xf32, #tpu.memory_space<vmem>>, %arg5: memref<1x32x32xf32, #tpu.memory_space<vmem>>, %arg6: memref<1x1x32xf32, #tpu.memory_space<vmem>>, %arg7: memref<1x32x32xf32, #tpu.memory_space<vmem>>, %arg8: memref<1x1x32xf32, #tpu.memory_space<vmem>>, %arg9: memref<1x32x32xf32, #tpu.memory_space<vmem>>, %arg10: memref<1x1x32xf32, #tpu.memory_space<vmem>>, %arg11: memref<1x32x32xf32, #tpu.memory_space<vmem>>, %arg12: memref<1x1x32xf32, #tpu.memory_space<vmem>>, %arg13: memref<1x1x32xf32, #tpu.memory_space<vmem>>, %arg14: memref<1x1x32xf32, #tpu.memory_space<vmem>>, %arg15: memref<1x32x64xf32, #tpu.memory_space<vmem>>, %arg16: memref<1x1x64xf32, #tpu.memory_space<vmem>>, %arg17: memref<1x64x32xf32, #tpu.memory_space<vmem>>, %arg18: memref<1x1x32xf32, #tpu.memory_space<vmem>>, %arg19: memref<1x32xf32, #tpu.memory_space<vmem>>, %arg20: memref<1x32xf32, #tpu.memory_space<vmem>>, %arg21: memref<1x8x32xf32, #tpu.memory_space<vmem>>, %arg22: memref<8x32xf32, #tpu.memory_space<vmem>>) attributes {dimension_semantics = [#tpu.dimension_semantics<parallel>, #tpu.dimension_semantics<arbitrary>], iteration_bounds = array<i64: 2, 2>, scalar_prefetch = 0 : i64, scratch_operands = 1 : i64, tpu.core_type = #tpu.core_type<tc>, window_params = [{transform_indices = @transform_0, window_bounds = array<i64: 1, 8, 32>}, {transform_indices = @transform_1, window_bounds = array<i64: 1, 1, 32>}, {transform_indices = @transform_2, window_bounds = array<i64: 1, 1, 32>}, {transform_indices = @transform_3, window_bounds = array<i64: 1, 32, 32>}, {transform_indices = @transform_4, window_bounds = array<i64: 1, 1, 32>}, {transform_indices = @transform_5, window_bounds = array<i64: 1, 32, 32>}, {transform_indices = @transform_6, window_bounds = array<i64: 1, 1, 32>}, {transform_indices = @transform_7, window_bounds = array<i64: 1, 32, 32>}, {transform_indices = @transform_8, window_bounds = array<i64: 1, 1, 32>}, {transform_indices = @transform_9, window_bounds = array<i64: 1, 32, 32>}, {transform_indices = @transform_10, window_bounds = array<i64: 1, 1, 32>}, {transform_indices = @transform_11, window_bounds = array<i64: 1, 1, 32>}, {transform_indices = @transform_12, window_bounds = array<i64: 1, 1, 32>}, {transform_indices = @transform_13, window_bounds = array<i64: 1, 32, 64>}, {transform_indices = @transform_14, window_bounds = array<i64: 1, 1, 64>}, {transform_indices = @transform_15, window_bounds = array<i64: 1, 64, 32>}, {transform_indices = @transform_16, window_bounds = array<i64: 1, 1, 32>}, {pipeline_mode = #tpu.pipeline_mode<synchronous>, transform_indices = @transform_17, window_bounds = array<i64: 1, 32>}, {pipeline_mode = #tpu.pipeline_mode<synchronous>, transform_indices = @transform_18, window_bounds = array<i64: 1, 32>}, {transform_indices = @transform_19, window_bounds = array<i64: 1, 8, 32>}]} {
    %c0_i32 = arith.constant 0 : i32
    %0 = arith.cmpi eq, %arg1, %c0_i32 : i32
    %1 = arith.extui %0 : i1 to i32
    %c0_i32_0 = arith.constant 0 : i32
    %2 = arith.cmpi ne, %1, %c0_i32_0 : i32
    scf.if %2 {
      %c0_93 = arith.constant 0 : index
      %c0_94 = arith.constant 0 : index
      %c0_95 = arith.constant 0 : index
      %183 = vector.load %arg2[%c0_93, %c0_94, %c0_95] : memref<1x8x32xf32, #tpu.memory_space<vmem>>, vector<1x8x32xf32>
      %184 = vector.shape_cast %183 : vector<1x8x32xf32> to vector<8x32xf32>
      %c0_96 = arith.constant 0 : index
      %c0_97 = arith.constant 0 : index
      %185 = vector.load %arg22[%c0_96, %c0_97] : memref<8x32xf32, #tpu.memory_space<vmem>>, vector<8x32xf32>
      tpu.vector_store %arg22[%c0_96, %c0_97], %184 {strides = array<i32>} : memref<8x32xf32, #tpu.memory_space<vmem>>, vector<8x32xf32>,
    } else {
    }
    %c0 = arith.constant 0 : index
    %c0_1 = arith.constant 0 : index
    %3 = vector.load %arg22[%c0, %c0_1] : memref<8x32xf32, #tpu.memory_space<vmem>>, vector<8x32xf32>
    %c0_2 = arith.constant 0 : index
    %c0_3 = arith.constant 0 : index
    %c0_4 = arith.constant 0 : index
    %4 = vector.load %arg3[%c0_2, %c0_3, %c0_4] : memref<1x1x32xf32, #tpu.memory_space<vmem>>, vector<1x1x32xf32>
    %5 = vector.shape_cast %4 : vector<1x1x32xf32> to vector<1x32xf32>
    %c0_5 = arith.constant 0 : index
    %c0_6 = arith.constant 0 : index
    %c0_7 = arith.constant 0 : index
    %6 = vector.load %arg4[%c0_5, %c0_6, %c0_7] : memref<1x1x32xf32, #tpu.memory_space<vmem>>, vector<1x1x32xf32>
    %7 = vector.shape_cast %6 : vector<1x1x32xf32> to vector<1x32xf32>
    %cst = arith.constant dense<0.000000e+00> : vector<8xf32>
    %8 = vector.multi_reduction <add>, %3, %cst [1] : vector<8x32xf32> to vector<8xf32>
    %9 = vector.shape_cast %8 : vector<8xf32> to vector<8x1xf32>
    %cst_8 = arith.constant 3.200000e+01 : f32
    %10 = vector.broadcast %cst_8 : f32 to vector<8x1xf32>
    %11 = arith.divf %9, %10 : vector<8x1xf32>
    %12 = arith.mulf %3, %3 : vector<8x32xf32>
    %cst_9 = arith.constant dense<0.000000e+00> : vector<8xf32>
    %13 = vector.multi_reduction <add>, %12, %cst_9 [1] : vector<8x32xf32> to vector<8xf32>
    %14 = vector.shape_cast %13 : vector<8xf32> to vector<8x1xf32>
    %cst_10 = arith.constant 3.200000e+01 : f32
    %15 = vector.broadcast %cst_10 : f32 to vector<8x1xf32>
    %16 = arith.divf %14, %15 : vector<8x1xf32>
    %17 = arith.mulf %11, %11 : vector<8x1xf32>
    %18 = arith.subf %16, %17 : vector<8x1xf32>
    %cst_11 = arith.constant 1.03225803 : f32
    %19 = vector.broadcast %cst_11 : f32 to vector<8x1xf32>
    %20 = arith.mulf %18, %19 : vector<8x1xf32>
    %cst_12 = arith.constant 0.000000e+00 : f32
    %21 = vector.broadcast %cst_12 : f32 to vector<8x1xf32>
    %22 = arith.maximumf %20, %21 : vector<8x1xf32>
    %23 = math.sqrt %22 : vector<8x1xf32>
    %24 = vector.broadcast %11 : vector<8x1xf32> to vector<8x32xf32>
    %25 = arith.subf %3, %24 : vector<8x32xf32>
    %cst_13 = arith.constant 9.99999997E-7 : f32
    %26 = vector.broadcast %cst_13 : f32 to vector<8x1xf32>
    %27 = arith.addf %23, %26 : vector<8x1xf32>
    %28 = vector.broadcast %27 : vector<8x1xf32> to vector<8x32xf32>
    %29 = arith.divf %25, %28 : vector<8x32xf32>
    %30 = vector.broadcast %5 : vector<1x32xf32> to vector<8x32xf32>
    %31 = arith.mulf %30, %29 : vector<8x32xf32>
    %32 = vector.broadcast %7 : vector<1x32xf32> to vector<8x32xf32>
    %33 = arith.addf %31, %32 : vector<8x32xf32>
    %c0_14 = arith.constant 0 : index
    %c0_15 = arith.constant 0 : index
    %c0_16 = arith.constant 0 : index
    %34 = vector.load %arg5[%c0_14, %c0_15, %c0_16] : memref<1x32x32xf32, #tpu.memory_space<vmem>>, vector<1x32x32xf32>
    %35 = vector.shape_cast %34 : vector<1x32x32xf32> to vector<32x32xf32>
    %cst_17 = arith.constant dense<0.000000e+00> : vector<8x32xf32>
    %36 = tpu.matmul %33, %35, %cst_17 {dimension_numbers = #tpu.dot_dimension_numbers<[1], [0], [0], [1], [0, 0, 1, 1], [], []>} : vector<8x32xf32>, vector<32x32xf32>, vector<8x32xf32> -> vector<8x32xf32>
    %c0_18 = arith.constant 0 : index
    %c0_19 = arith.constant 0 : index
    %c0_20 = arith.constant 0 : index
    %37 = vector.load %arg6[%c0_18, %c0_19, %c0_20] : memref<1x1x32xf32, #tpu.memory_space<vmem>>, vector<1x1x32xf32>
    %38 = vector.shape_cast %37 : vector<1x1x32xf32> to vector<1x32xf32>
    %39 = vector.broadcast %38 : vector<1x32xf32> to vector<8x32xf32>
    %40 = arith.addf %36, %39 : vector<8x32xf32>
    %c0_21 = arith.constant 0 : index
    %c0_22 = arith.constant 0 : index
    %c0_23 = arith.constant 0 : index
    %41 = vector.load %arg7[%c0_21, %c0_22, %c0_23] : memref<1x32x32xf32, #tpu.memory_space<vmem>>, vector<1x32x32xf32>
    %42 = vector.shape_cast %41 : vector<1x32x32xf32> to vector<32x32xf32>
    %cst_24 = arith.constant dense<0.000000e+00> : vector<8x32xf32>
    %43 = tpu.matmul %33, %42, %cst_24 {dimension_numbers = #tpu.dot_dimension_numbers<[1], [0], [0], [1], [0, 0, 1, 1], [], []>} : vector<8x32xf32>, vector<32x32xf32>, vector<8x32xf32> -> vector<8x32xf32>
    %c0_25 = arith.constant 0 : index
    %c0_26 = arith.constant 0 : index
    %c0_27 = arith.constant 0 : index
    %44 = vector.load %arg8[%c0_25, %c0_26, %c0_27] : memref<1x1x32xf32, #tpu.memory_space<vmem>>, vector<1x1x32xf32>
    %45 = vector.shape_cast %44 : vector<1x1x32xf32> to vector<1x32xf32>
    %46 = vector.broadcast %45 : vector<1x32xf32> to vector<8x32xf32>
    %47 = arith.addf %43, %46 : vector<8x32xf32>
    %c0_28 = arith.constant 0 : index
    %c0_29 = arith.constant 0 : index
    %c0_30 = arith.constant 0 : index
    %48 = vector.load %arg9[%c0_28, %c0_29, %c0_30] : memref<1x32x32xf32, #tpu.memory_space<vmem>>, vector<1x32x32xf32>
    %49 = vector.shape_cast %48 : vector<1x32x32xf32> to vector<32x32xf32>
    %cst_31 = arith.constant dense<0.000000e+00> : vector<8x32xf32>
    %50 = tpu.matmul %33, %49, %cst_31 {dimension_numbers = #tpu.dot_dimension_numbers<[1], [0], [0], [1], [0, 0, 1, 1], [], []>} : vector<8x32xf32>, vector<32x32xf32>, vector<8x32xf32> -> vector<8x32xf32>
    %c0_32 = arith.constant 0 : index
    %c0_33 = arith.constant 0 : index
    %c0_34 = arith.constant 0 : index
    %51 = vector.load %arg10[%c0_32, %c0_33, %c0_34] : memref<1x1x32xf32, #tpu.memory_space<vmem>>, vector<1x1x32xf32>
    %52 = vector.shape_cast %51 : vector<1x1x32xf32> to vector<1x32xf32>
    %53 = vector.broadcast %52 : vector<1x32xf32> to vector<8x32xf32>
    %54 = arith.addf %50, %53 : vector<8x32xf32>
    %55 = vector.extract_strided_slice %40 {offsets = [0, 0], sizes = [8, 8], strides = [1, 1]} : vector<8x32xf32> to vector<8x8xf32>
    %56 = vector.extract_strided_slice %47 {offsets = [0, 0], sizes = [8, 8], strides = [1, 1]} : vector<8x32xf32> to vector<8x8xf32>
    %57 = vector.extract_strided_slice %54 {offsets = [0, 0], sizes = [8, 8], strides = [1, 1]} : vector<8x32xf32> to vector<8x8xf32>
    %cst_35 = arith.constant dense<0.000000e+00> : vector<8x8xf32>
    %58 = tpu.matmul %55, %56, %cst_35 {dimension_numbers = #tpu.dot_dimension_numbers<[1], [1], [0], [0], [0, 0, 1, 0], [], []>} : vector<8x8xf32>, vector<8x8xf32>, vector<8x8xf32> -> vector<8x8xf32>
    %cst_36 = arith.constant 0.353553385 : f32
    %59 = vector.broadcast %cst_36 : f32 to vector<8x8xf32>
    %60 = arith.mulf %58, %59 : vector<8x8xf32>
    %cst_37 = arith.constant dense<0xFF800000> : vector<8xf32>
    %61 = vector.multi_reduction <maximumf>, %60, %cst_37 [1] : vector<8x8xf32> to vector<8xf32>
    %62 = vector.shape_cast %61 : vector<8xf32> to vector<8x1xf32>
    %63 = vector.broadcast %62 : vector<8x1xf32> to vector<8x8xf32>
    %64 = arith.subf %60, %63 : vector<8x8xf32>
    %65 = math.exp %64 : vector<8x8xf32>
    %cst_38 = arith.constant dense<0.000000e+00> : vector<8xf32>
    %66 = vector.multi_reduction <add>, %65, %cst_38 [1] : vector<8x8xf32> to vector<8xf32>
    %67 = vector.shape_cast %66 : vector<8xf32> to vector<8x1xf32>
    %68 = tpu.reciprocal %67 {approx = true} : vector<8x1xf32> -> vector<8x1xf32>
    %69 = vector.broadcast %68 : vector<8x1xf32> to vector<8x8xf32>
    %70 = arith.mulf %65, %69 : vector<8x8xf32>
    %cst_39 = arith.constant dense<0.000000e+00> : vector<8x8xf32>
    %71 = tpu.matmul %70, %57, %cst_39 {dimension_numbers = #tpu.dot_dimension_numbers<[1], [0], [0], [1], [0, 0, 1, 1], [], []>} : vector<8x8xf32>, vector<8x8xf32>, vector<8x8xf32> -> vector<8x8xf32>
    %72 = vector.extract_strided_slice %40 {offsets = [0, 8], sizes = [8, 8], strides = [1, 1]} : vector<8x32xf32> to vector<8x8xf32>
    %73 = vector.extract_strided_slice %47 {offsets = [0, 8], sizes = [8, 8], strides = [1, 1]} : vector<8x32xf32> to vector<8x8xf32>
    %74 = vector.extract_strided_slice %54 {offsets = [0, 8], sizes = [8, 8], strides = [1, 1]} : vector<8x32xf32> to vector<8x8xf32>
    %cst_40 = arith.constant dense<0.000000e+00> : vector<8x8xf32>
    %75 = tpu.matmul %72, %73, %cst_40 {dimension_numbers = #tpu.dot_dimension_numbers<[1], [1], [0], [0], [0, 0, 1, 0], [], []>} : vector<8x8xf32>, vector<8x8xf32>, vector<8x8xf32> -> vector<8x8xf32>
    %cst_41 = arith.constant 0.353553385 : f32
    %76 = vector.broadcast %cst_41 : f32 to vector<8x8xf32>
    %77 = arith.mulf %75, %76 : vector<8x8xf32>
    %cst_42 = arith.constant dense<0xFF800000> : vector<8xf32>
    %78 = vector.multi_reduction <maximumf>, %77, %cst_42 [1] : vector<8x8xf32> to vector<8xf32>
    %79 = vector.shape_cast %78 : vector<8xf32> to vector<8x1xf32>
    %80 = vector.broadcast %79 : vector<8x1xf32> to vector<8x8xf32>
    %81 = arith.subf %77, %80 : vector<8x8xf32>
    %82 = math.exp %81 : vector<8x8xf32>
    %cst_43 = arith.constant dense<0.000000e+00> : vector<8xf32>
    %83 = vector.multi_reduction <add>, %82, %cst_43 [1] : vector<8x8xf32> to vector<8xf32>
    %84 = vector.shape_cast %83 : vector<8xf32> to vector<8x1xf32>
    %85 = tpu.reciprocal %84 {approx = true} : vector<8x1xf32> -> vector<8x1xf32>
    %86 = vector.broadcast %85 : vector<8x1xf32> to vector<8x8xf32>
    %87 = arith.mulf %82, %86 : vector<8x8xf32>
    %cst_44 = arith.constant dense<0.000000e+00> : vector<8x8xf32>
    %88 = tpu.matmul %87, %74, %cst_44 {dimension_numbers = #tpu.dot_dimension_numbers<[1], [0], [0], [1], [0, 0, 1, 1], [], []>} : vector<8x8xf32>, vector<8x8xf32>, vector<8x8xf32> -> vector<8x8xf32>
    %89 = vector.extract_strided_slice %40 {offsets = [0, 16], sizes = [8, 8], strides = [1, 1]} : vector<8x32xf32> to vector<8x8xf32>
    %90 = vector.extract_strided_slice %47 {offsets = [0, 16], sizes = [8, 8], strides = [1, 1]} : vector<8x32xf32> to vector<8x8xf32>
    %91 = vector.extract_strided_slice %54 {offsets = [0, 16], sizes = [8, 8], strides = [1, 1]} : vector<8x32xf32> to vector<8x8xf32>
    %cst_45 = arith.constant dense<0.000000e+00> : vector<8x8xf32>
    %92 = tpu.matmul %89, %90, %cst_45 {dimension_numbers = #tpu.dot_dimension_numbers<[1], [1], [0], [0], [0, 0, 1, 0], [], []>} : vector<8x8xf32>, vector<8x8xf32>, vector<8x8xf32> -> vector<8x8xf32>
    %cst_46 = arith.constant 0.353553385 : f32
    %93 = vector.broadcast %cst_46 : f32 to vector<8x8xf32>
    %94 = arith.mulf %92, %93 : vector<8x8xf32>
    %cst_47 = arith.constant dense<0xFF800000> : vector<8xf32>
    %95 = vector.multi_reduction <maximumf>, %94, %cst_47 [1] : vector<8x8xf32> to vector<8xf32>
    %96 = vector.shape_cast %95 : vector<8xf32> to vector<8x1xf32>
    %97 = vector.broadcast %96 : vector<8x1xf32> to vector<8x8xf32>
    %98 = arith.subf %94, %97 : vector<8x8xf32>
    %99 = math.exp %98 : vector<8x8xf32>
    %cst_48 = arith.constant dense<0.000000e+00> : vector<8xf32>
    %100 = vector.multi_reduction <add>, %99, %cst_48 [1] : vector<8x8xf32> to vector<8xf32>
    %101 = vector.shape_cast %100 : vector<8xf32> to vector<8x1xf32>
    %102 = tpu.reciprocal %101 {approx = true} : vector<8x1xf32> -> vector<8x1xf32>
    %103 = vector.broadcast %102 : vector<8x1xf32> to vector<8x8xf32>
    %104 = arith.mulf %99, %103 : vector<8x8xf32>
    %cst_49 = arith.constant dense<0.000000e+00> : vector<8x8xf32>
    %105 = tpu.matmul %104, %91, %cst_49 {dimension_numbers = #tpu.dot_dimension_numbers<[1], [0], [0], [1], [0, 0, 1, 1], [], []>} : vector<8x8xf32>, vector<8x8xf32>, vector<8x8xf32> -> vector<8x8xf32>
    %106 = vector.extract_strided_slice %40 {offsets = [0, 24], sizes = [8, 8], strides = [1, 1]} : vector<8x32xf32> to vector<8x8xf32>
    %107 = vector.extract_strided_slice %47 {offsets = [0, 24], sizes = [8, 8], strides = [1, 1]} : vector<8x32xf32> to vector<8x8xf32>
    %108 = vector.extract_strided_slice %54 {offsets = [0, 24], sizes = [8, 8], strides = [1, 1]} : vector<8x32xf32> to vector<8x8xf32>
    %cst_50 = arith.constant dense<0.000000e+00> : vector<8x8xf32>
    %109 = tpu.matmul %106, %107, %cst_50 {dimension_numbers = #tpu.dot_dimension_numbers<[1], [1], [0], [0], [0, 0, 1, 0], [], []>} : vector<8x8xf32>, vector<8x8xf32>, vector<8x8xf32> -> vector<8x8xf32>
    %cst_51 = arith.constant 0.353553385 : f32
    %110 = vector.broadcast %cst_51 : f32 to vector<8x8xf32>
    %111 = arith.mulf %109, %110 : vector<8x8xf32>
    %cst_52 = arith.constant dense<0xFF800000> : vector<8xf32>
    %112 = vector.multi_reduction <maximumf>, %111, %cst_52 [1] : vector<8x8xf32> to vector<8xf32>
    %113 = vector.shape_cast %112 : vector<8xf32> to vector<8x1xf32>
    %114 = vector.broadcast %113 : vector<8x1xf32> to vector<8x8xf32>
    %115 = arith.subf %111, %114 : vector<8x8xf32>
    %116 = math.exp %115 : vector<8x8xf32>
    %cst_53 = arith.constant dense<0.000000e+00> : vector<8xf32>
    %117 = vector.multi_reduction <add>, %116, %cst_53 [1] : vector<8x8xf32> to vector<8xf32>
    %118 = vector.shape_cast %117 : vector<8xf32> to vector<8x1xf32>
    %119 = tpu.reciprocal %118 {approx = true} : vector<8x1xf32> -> vector<8x1xf32>
    %120 = vector.broadcast %119 : vector<8x1xf32> to vector<8x8xf32>
    %121 = arith.mulf %116, %120 : vector<8x8xf32>
    %cst_54 = arith.constant dense<0.000000e+00> : vector<8x8xf32>
    %122 = tpu.matmul %121, %108, %cst_54 {dimension_numbers = #tpu.dot_dimension_numbers<[1], [0], [0], [1], [0, 0, 1, 1], [], []>} : vector<8x8xf32>, vector<8x8xf32>, vector<8x8xf32> -> vector<8x8xf32>
    %123 = tpu.concatenate %71, %88, %105, %122 in 1 : vector<8x8xf32>, vector<8x8xf32>, vector<8x8xf32>, vector<8x8xf32> -> vector<8x32xf32>
    %c0_55 = arith.constant 0 : index
    %c0_56 = arith.constant 0 : index
    %c0_57 = arith.constant 0 : index
    %124 = vector.load %arg11[%c0_55, %c0_56, %c0_57] : memref<1x32x32xf32, #tpu.memory_space<vmem>>, vector<1x32x32xf32>
    %125 = vector.shape_cast %124 : vector<1x32x32xf32> to vector<32x32xf32>
    %cst_58 = arith.constant dense<0.000000e+00> : vector<8x32xf32>
    %126 = tpu.matmul %123, %125, %cst_58 {dimension_numbers = #tpu.dot_dimension_numbers<[1], [0], [0], [1], [0, 0, 1, 1], [], []>} : vector<8x32xf32>, vector<32x32xf32>, vector<8x32xf32> -> vector<8x32xf32>
    %127 = arith.addf %3, %126 : vector<8x32xf32>
    %c0_59 = arith.constant 0 : index
    %c0_60 = arith.constant 0 : index
    %c0_61 = arith.constant 0 : index
    %128 = vector.load %arg12[%c0_59, %c0_60, %c0_61] : memref<1x1x32xf32, #tpu.memory_space<vmem>>, vector<1x1x32xf32>
    %129 = vector.shape_cast %128 : vector<1x1x32xf32> to vector<1x32xf32>
    %130 = vector.broadcast %129 : vector<1x32xf32> to vector<8x32xf32>
    %131 = arith.addf %127, %130 : vector<8x32xf32>
    %c0_62 = arith.constant 0 : index
    %c0_63 = arith.constant 0 : index
    %c0_64 = arith.constant 0 : index
    %132 = vector.load %arg13[%c0_62, %c0_63, %c0_64] : memref<1x1x32xf32, #tpu.memory_space<vmem>>, vector<1x1x32xf32>
    %133 = vector.shape_cast %132 : vector<1x1x32xf32> to vector<1x32xf32>
    %c0_65 = arith.constant 0 : index
    %c0_66 = arith.constant 0 : index
    %c0_67 = arith.constant 0 : index
    %134 = vector.load %arg14[%c0_65, %c0_66, %c0_67] : memref<1x1x32xf32, #tpu.memory_space<vmem>>, vector<1x1x32xf32>
    %135 = vector.shape_cast %134 : vector<1x1x32xf32> to vector<1x32xf32>
    %cst_68 = arith.constant dense<0.000000e+00> : vector<8xf32>
    %136 = vector.multi_reduction <add>, %131, %cst_68 [1] : vector<8x32xf32> to vector<8xf32>
    %137 = vector.shape_cast %136 : vector<8xf32> to vector<8x1xf32>
    %cst_69 = arith.constant 3.200000e+01 : f32
    %138 = vector.broadcast %cst_69 : f32 to vector<8x1xf32>
    %139 = arith.divf %137, %138 : vector<8x1xf32>
    %140 = arith.mulf %131, %131 : vector<8x32xf32>
    %cst_70 = arith.constant dense<0.000000e+00> : vector<8xf32>
    %141 = vector.multi_reduction <add>, %140, %cst_70 [1] : vector<8x32xf32> to vector<8xf32>
    %142 = vector.shape_cast %141 : vector<8xf32> to vector<8x1xf32>
    %cst_71 = arith.constant 3.200000e+01 : f32
    %143 = vector.broadcast %cst_71 : f32 to vector<8x1xf32>
    %144 = arith.divf %142, %143 : vector<8x1xf32>
    %145 = arith.mulf %139, %139 : vector<8x1xf32>
    %146 = arith.subf %144, %145 : vector<8x1xf32>
    %cst_72 = arith.constant 1.03225803 : f32
    %147 = vector.broadcast %cst_72 : f32 to vector<8x1xf32>
    %148 = arith.mulf %146, %147 : vector<8x1xf32>
    %cst_73 = arith.constant 0.000000e+00 : f32
    %149 = vector.broadcast %cst_73 : f32 to vector<8x1xf32>
    %150 = arith.maximumf %148, %149 : vector<8x1xf32>
    %151 = math.sqrt %150 : vector<8x1xf32>
    %152 = vector.broadcast %139 : vector<8x1xf32> to vector<8x32xf32>
    %153 = arith.subf %131, %152 : vector<8x32xf32>
    %cst_74 = arith.constant 9.99999997E-7 : f32
    %154 = vector.broadcast %cst_74 : f32 to vector<8x1xf32>
    %155 = arith.addf %151, %154 : vector<8x1xf32>
    %156 = vector.broadcast %155 : vector<8x1xf32> to vector<8x32xf32>
    %157 = arith.divf %153, %156 : vector<8x32xf32>
    %158 = vector.broadcast %133 : vector<1x32xf32> to vector<8x32xf32>
    %159 = arith.mulf %158, %157 : vector<8x32xf32>
    %160 = vector.broadcast %135 : vector<1x32xf32> to vector<8x32xf32>
    %161 = arith.addf %159, %160 : vector<8x32xf32>
    %c0_75 = arith.constant 0 : index
    %c0_76 = arith.constant 0 : index
    %c0_77 = arith.constant 0 : index
    %162 = vector.load %arg15[%c0_75, %c0_76, %c0_77] : memref<1x32x64xf32, #tpu.memory_space<vmem>>, vector<1x32x64xf32>
    %163 = vector.shape_cast %162 : vector<1x32x64xf32> to vector<32x64xf32>
    %cst_78 = arith.constant dense<0.000000e+00> : vector<8x64xf32>
    %164 = tpu.matmul %161, %163, %cst_78 {dimension_numbers = #tpu.dot_dimension_numbers<[1], [0], [0], [1], [0, 0, 1, 1], [], []>} : vector<8x32xf32>, vector<32x64xf32>, vector<8x64xf32> -> vector<8x64xf32>
    %c0_79 = arith.constant 0 : index
    %c0_80 = arith.constant 0 : index
    %c0_81 = arith.constant 0 : index
    %165 = vector.load %arg16[%c0_79, %c0_80, %c0_81] : memref<1x1x64xf32, #tpu.memory_space<vmem>>, vector<1x1x64xf32>
    %166 = vector.shape_cast %165 : vector<1x1x64xf32> to vector<1x64xf32>
    %167 = vector.broadcast %166 : vector<1x64xf32> to vector<8x64xf32>
    %168 = arith.addf %164, %167 : vector<8x64xf32>
    %cst_82 = arith.constant 0.000000e+00 : f32
    %169 = vector.broadcast %cst_82 : f32 to vector<8x64xf32>
    %170 = arith.maximumf %168, %169 : vector<8x64xf32>
    %c0_83 = arith.constant 0 : index
    %c0_84 = arith.constant 0 : index
    %c0_85 = arith.constant 0 : index
    %171 = vector.load %arg17[%c0_83, %c0_84, %c0_85] : memref<1x64x32xf32, #tpu.memory_space<vmem>>, vector<1x64x32xf32>
    %172 = vector.shape_cast %171 : vector<1x64x32xf32> to vector<64x32xf32>
    %cst_86 = arith.constant dense<0.000000e+00> : vector<8x32xf32>
    %173 = tpu.matmul %170, %172, %cst_86 {dimension_numbers = #tpu.dot_dimension_numbers<[1], [0], [0], [1], [0, 0, 1, 1], [], []>} : vector<8x64xf32>, vector<64x32xf32>, vector<8x32xf32> -> vector<8x32xf32>
    %174 = arith.addf %131, %173 : vector<8x32xf32>
    %c0_87 = arith.constant 0 : index
    %c0_88 = arith.constant 0 : index
    %c0_89 = arith.constant 0 : index
    %175 = vector.load %arg18[%c0_87, %c0_88, %c0_89] : memref<1x1x32xf32, #tpu.memory_space<vmem>>, vector<1x1x32xf32>
    %176 = vector.shape_cast %175 : vector<1x1x32xf32> to vector<1x32xf32>
    %177 = vector.broadcast %176 : vector<1x32xf32> to vector<8x32xf32>
    %178 = arith.addf %174, %177 : vector<8x32xf32>
    %c0_90 = arith.constant 0 : index
    %c0_91 = arith.constant 0 : index
    %179 = vector.load %arg22[%c0_90, %c0_91] : memref<8x32xf32, #tpu.memory_space<vmem>>, vector<8x32xf32>
    tpu.vector_store %arg22[%c0_90, %c0_91], %178 {strides = array<i32>} : memref<8x32xf32, #tpu.memory_space<vmem>>, vector<8x32xf32>,
    %c1_i32 = arith.constant 1 : i32
    %180 = arith.cmpi eq, %arg1, %c1_i32 : i32
    %181 = arith.extui %180 : i1 to i32
    %c0_i32_92 = arith.constant 0 : i32
    %182 = arith.cmpi ne, %181, %c0_i32_92 : i32
    scf.if %182 {
      %c0_93 = arith.constant 0 : index
      %c0_94 = arith.constant 0 : index
      %183 = vector.load %arg19[%c0_93, %c0_94] : memref<1x32xf32, #tpu.memory_space<vmem>>, vector<1x32xf32>
      %c0_95 = arith.constant 0 : index
      %c0_96 = arith.constant 0 : index
      %184 = vector.load %arg20[%c0_95, %c0_96] : memref<1x32xf32, #tpu.memory_space<vmem>>, vector<1x32xf32>
      %cst_97 = arith.constant dense<0.000000e+00> : vector<8xf32>
      %185 = vector.multi_reduction <add>, %178, %cst_97 [1] : vector<8x32xf32> to vector<8xf32>
      %186 = vector.shape_cast %185 : vector<8xf32> to vector<8x1xf32>
      %cst_98 = arith.constant 3.200000e+01 : f32
      %187 = vector.broadcast %cst_98 : f32 to vector<8x1xf32>
      %188 = arith.divf %186, %187 : vector<8x1xf32>
      %189 = arith.mulf %178, %178 : vector<8x32xf32>
      %cst_99 = arith.constant dense<0.000000e+00> : vector<8xf32>
      %190 = vector.multi_reduction <add>, %189, %cst_99 [1] : vector<8x32xf32> to vector<8xf32>
      %191 = vector.shape_cast %190 : vector<8xf32> to vector<8x1xf32>
      %cst_100 = arith.constant 3.200000e+01 : f32
      %192 = vector.broadcast %cst_100 : f32 to vector<8x1xf32>
      %193 = arith.divf %191, %192 : vector<8x1xf32>
      %194 = arith.mulf %188, %188 : vector<8x1xf32>
      %195 = arith.subf %193, %194 : vector<8x1xf32>
      %cst_101 = arith.constant 1.03225803 : f32
      %196 = vector.broadcast %cst_101 : f32 to vector<8x1xf32>
      %197 = arith.mulf %195, %196 : vector<8x1xf32>
      %cst_102 = arith.constant 0.000000e+00 : f32
      %198 = vector.broadcast %cst_102 : f32 to vector<8x1xf32>
      %199 = arith.maximumf %197, %198 : vector<8x1xf32>
      %200 = math.sqrt %199 : vector<8x1xf32>
      %201 = vector.broadcast %188 : vector<8x1xf32> to vector<8x32xf32>
      %202 = arith.subf %178, %201 : vector<8x32xf32>
      %cst_103 = arith.constant 9.99999997E-7 : f32
      %203 = vector.broadcast %cst_103 : f32 to vector<8x1xf32>
      %204 = arith.addf %200, %203 : vector<8x1xf32>
      %205 = vector.broadcast %204 : vector<8x1xf32> to vector<8x32xf32>
      %206 = arith.divf %202, %205 : vector<8x32xf32>
      %207 = vector.broadcast %183 : vector<1x32xf32> to vector<8x32xf32>
      %208 = arith.mulf %207, %206 : vector<8x32xf32>
      %209 = vector.broadcast %184 : vector<1x32xf32> to vector<8x32xf32>
      %210 = arith.addf %208, %209 : vector<8x32xf32>
      %c0_104 = arith.constant 0 : index
      %c0_105 = arith.constant 0 : index
      %c0_106 = arith.constant 0 : index
      %211 = vector.load %arg21[%c0_104, %c0_105, %c0_106] : memref<1x8x32xf32, #tpu.memory_space<vmem>>, vector<1x8x32xf32>
      %212 = vector.shape_cast %211 : vector<1x8x32xf32> to vector<8x32xf32>
      %213 = vector.shape_cast %210 : vector<8x32xf32> to vector<1x8x32xf32>
      tpu.vector_store %arg21[%c0_104, %c0_105, %c0_106], %213 {strides = array<i32>} : memref<1x8x32xf32, #tpu.memory_space<vmem>>, vector<1x8x32xf32>,
    } else {
    }
    return
  }
  func.func @transform_0(%arg0: i32, %arg1: i32) -> (i32, i32, i32) {
    %c0_i32 = arith.constant 0 : i32
    %c0_i32_0 = arith.constant 0 : i32
    %c0_i32_1 = arith.constant 0 : i32
    return %arg0, %c0_i32, %c0_i32_0 : i32, i32, i32
  }
  func.func @transform_1(%arg0: i32, %arg1: i32) -> (i32, i32, i32) {
    %c0_i32 = arith.constant 0 : i32
    %c0_i32_0 = arith.constant 0 : i32
    %c0_i32_1 = arith.constant 0 : i32
    return %arg1, %c0_i32, %c0_i32_0 : i32, i32, i32
  }
  func.func @transform_2(%arg0: i32, %arg1: i32) -> (i32, i32, i32) {
    %c0_i32 = arith.constant 0 : i32
    %c0_i32_0 = arith.constant 0 : i32
    %c0_i32_1 = arith.constant 0 : i32
    return %arg1, %c0_i32, %c0_i32_0 : i32, i32, i32
  }
  func.func @transform_3(%arg0: i32, %arg1: i32) -> (i32, i32, i32) {
    %c0_i32 = arith.constant 0 : i32
    %c0_i32_0 = arith.constant 0 : i32
    %c0_i32_1 = arith.constant 0 : i32
    return %arg1, %c0_i32, %c0_i32_0 : i32, i32, i32
  }
  func.func @transform_4(%arg0: i32, %arg1: i32) -> (i32, i32, i32) {
    %c0_i32 = arith.constant 0 : i32
    %c0_i32_0 = arith.constant 0 : i32
    %c0_i32_1 = arith.constant 0 : i32
    return %arg1, %c0_i32, %c0_i32_0 : i32, i32, i32
  }
  func.func @transform_5(%arg0: i32, %arg1: i32) -> (i32, i32, i32) {
    %c0_i32 = arith.constant 0 : i32
    %c0_i32_0 = arith.constant 0 : i32
    %c0_i32_1 = arith.constant 0 : i32
    return %arg1, %c0_i32, %c0_i32_0 : i32, i32, i32
  }
  func.func @transform_6(%arg0: i32, %arg1: i32) -> (i32, i32, i32) {
    %c0_i32 = arith.constant 0 : i32
    %c0_i32_0 = arith.constant 0 : i32
    %c0_i32_1 = arith.constant 0 : i32
    return %arg1, %c0_i32, %c0_i32_0 : i32, i32, i32
  }
  func.func @transform_7(%arg0: i32, %arg1: i32) -> (i32, i32, i32) {
    %c0_i32 = arith.constant 0 : i32
    %c0_i32_0 = arith.constant 0 : i32
    %c0_i32_1 = arith.constant 0 : i32
    return %arg1, %c0_i32, %c0_i32_0 : i32, i32, i32
  }
  func.func @transform_8(%arg0: i32, %arg1: i32) -> (i32, i32, i32) {
    %c0_i32 = arith.constant 0 : i32
    %c0_i32_0 = arith.constant 0 : i32
    %c0_i32_1 = arith.constant 0 : i32
    return %arg1, %c0_i32, %c0_i32_0 : i32, i32, i32
  }
  func.func @transform_9(%arg0: i32, %arg1: i32) -> (i32, i32, i32) {
    %c0_i32 = arith.constant 0 : i32
    %c0_i32_0 = arith.constant 0 : i32
    %c0_i32_1 = arith.constant 0 : i32
    return %arg1, %c0_i32, %c0_i32_0 : i32, i32, i32
  }
  func.func @transform_10(%arg0: i32, %arg1: i32) -> (i32, i32, i32) {
    %c0_i32 = arith.constant 0 : i32
    %c0_i32_0 = arith.constant 0 : i32
    %c0_i32_1 = arith.constant 0 : i32
    return %arg1, %c0_i32, %c0_i32_0 : i32, i32, i32
  }
  func.func @transform_11(%arg0: i32, %arg1: i32) -> (i32, i32, i32) {
    %c0_i32 = arith.constant 0 : i32
    %c0_i32_0 = arith.constant 0 : i32
    %c0_i32_1 = arith.constant 0 : i32
    return %arg1, %c0_i32, %c0_i32_0 : i32, i32, i32
  }
  func.func @transform_12(%arg0: i32, %arg1: i32) -> (i32, i32, i32) {
    %c0_i32 = arith.constant 0 : i32
    %c0_i32_0 = arith.constant 0 : i32
    %c0_i32_1 = arith.constant 0 : i32
    return %arg1, %c0_i32, %c0_i32_0 : i32, i32, i32
  }
  func.func @transform_13(%arg0: i32, %arg1: i32) -> (i32, i32, i32) {
    %c0_i32 = arith.constant 0 : i32
    %c0_i32_0 = arith.constant 0 : i32
    %c0_i32_1 = arith.constant 0 : i32
    return %arg1, %c0_i32, %c0_i32_0 : i32, i32, i32
  }
  func.func @transform_14(%arg0: i32, %arg1: i32) -> (i32, i32, i32) {
    %c0_i32 = arith.constant 0 : i32
    %c0_i32_0 = arith.constant 0 : i32
    %c0_i32_1 = arith.constant 0 : i32
    return %arg1, %c0_i32, %c0_i32_0 : i32, i32, i32
  }
  func.func @transform_15(%arg0: i32, %arg1: i32) -> (i32, i32, i32) {
    %c0_i32 = arith.constant 0 : i32
    %c0_i32_0 = arith.constant 0 : i32
    %c0_i32_1 = arith.constant 0 : i32
    return %arg1, %c0_i32, %c0_i32_0 : i32, i32, i32
  }
  func.func @transform_16(%arg0: i32, %arg1: i32) -> (i32, i32, i32) {
    %c0_i32 = arith.constant 0 : i32
    %c0_i32_0 = arith.constant 0 : i32
    %c0_i32_1 = arith.constant 0 : i32
    return %arg1, %c0_i32, %c0_i32_0 : i32, i32, i32
  }
  func.func @transform_17(%arg0: i32, %arg1: i32) -> (i32, i32) {
    %c0_i32 = arith.constant 0 : i32
    %c0_i32_0 = arith.constant 0 : i32
    %c0_i32_1 = arith.constant 0 : i32
    return %c0_i32, %c0_i32_0 : i32, i32
  }
  func.func @transform_18(%arg0: i32, %arg1: i32) -> (i32, i32) {
    %c0_i32 = arith.constant 0 : i32
    %c0_i32_0 = arith.constant 0 : i32
    %c0_i32_1 = arith.constant 0 : i32
    return %c0_i32, %c0_i32_0 : i32, i32
  }
  func.func @transform_19(%arg0: i32, %arg1: i32) -> (i32, i32, i32) {
    %c0_i32 = arith.constant 0 : i32
    %c0_i32_0 = arith.constant 0 : i32
    %c0_i32_1 = arith.constant 0 : i32
    return %arg0, %c0_i32, %c0_i32_0 : i32, i32, i32
  }
}

</mosaic_0001>

<llo_original>
// kernel: encoder_forward.1
$region0: #{encoder_forward.1}
  #allocation0 [shape = 'u32[]', space=smem, size = 0x4, offset = 0x4, fixed_abs, tag = 'smem constant byte address 0x4 - core index']
  #allocation1 [shape = 'u32[72,128]{1,0:T(1,128)}', space=vmem, size = 0x9000, scoped, tag = 'internal scratch']
  #allocation2 [shape = 'f32[8,32]{1,0:T(8,128)}', space=vmem, size = 0x1000, scoped, tag = 'scratch operand']
  %s0 = inlined_call_operand.hbm [shape: f32[2,8,32], index: 0, kind: input, shape index: {}]
  %s1 = inlined_call_operand.vmem [shape: f32[2,1,32], index: 1, kind: input, shape index: {}]
  %s2 = inlined_call_operand.vmem [shape: f32[2,1,32], index: 2, kind: input, shape index: {}]
  %s3 = inlined_call_operand.vmem [shape: f32[2,32,32], index: 3, kind: input, shape index: {}]
  %s4 = inlined_call_operand.hbm [shape: f32[2,1,32], index: 4, kind: input, shape index: {}]
  %s5 = inlined_call_operand.vmem [shape: f32[2,32,32], index: 5, kind: input, shape index: {}]
  %s6 = inlined_call_operand.hbm [shape: f32[2,1,32], index: 6, kind: input, shape index: {}]
  %s7 = inlined_call_operand.vmem [shape: f32[2,32,32], index: 7, kind: input, shape index: {}]
  %s8 = inlined_call_operand.hbm [shape: f32[2,1,32], index: 8, kind: input, shape index: {}]
  %s9 = inlined_call_operand.hbm [shape: f32[2,32,32], index: 9, kind: input, shape index: {}]
  %s10 = inlined_call_operand.hbm [shape: f32[2,1,32], index: 10, kind: input, shape index: {}]
  %s11 = inlined_call_operand.vmem [shape: f32[2,1,32], index: 11, kind: input, shape index: {}]
  %s12 = inlined_call_operand.vmem [shape: f32[2,1,32], index: 12, kind: input, shape index: {}]
  %s13 = inlined_call_operand.hbm [shape: f32[2,32,64], index: 13, kind: input, shape index: {}]
  %s14 = inlined_call_operand.hbm [shape: f32[2,1,64], index: 14, kind: input, shape index: {}]
  %s15 = inlined_call_operand.vmem [shape: f32[2,64,32], index: 15, kind: input, shape index: {}]
  %s16 = inlined_call_operand.hbm [shape: f32[2,1,32], index: 16, kind: input, shape index: {}]
  %s17 = inlined_call_operand.vmem [shape: f32[1,32], index: 17, kind: input, shape index: {}]
  %s18 = inlined_call_operand.vmem [shape: f32[1,32], index: 18, kind: input, shape index: {}]
  %s19 = inlined_call_operand.hbm [shape: f32[2,8,32], index: 19, kind: output, shape index: {}]
  %s20 = sld [smem:[#allocation0]]
  $region153: #{encoder_forward.1} parent=0
    _
  %s22 = ssub.s32 1, %s20
  %s23 = scalar_select 0, %s22, %s20
  $region1: #{encoder_forward.1} parent=0
    #allocation3 [shape = 'u8[8192]{0}', space=vmem, size = 0x2000, scoped, tag = 'input window, operand 0']
    #allocation4 [shape = 's32[2]{0}', space=sflag, size = 0x8, scoped, tag = 'scoped memory for encoder_forward.1']
    #allocation5 [shape = 's32[2]{0}', space=sflag, size = 0x8, scoped, tag = 'scoped memory for encoder_forward.1']
    #allocation6 [shape = 'u8[1024]{0}', space=vmem, size = 0x400, scoped, tag = 'input window, operand 4']
    #allocation7 [shape = 's32[2]{0}', space=sflag, size = 0x8, scoped, tag = 'scoped memory for encoder_forward.1']
    #allocation8 [shape = 'u8[1024]{0}', space=vmem, size = 0x400, scoped, tag = 'input window, operand 6']
    #allocation9 [shape = 'u8[1024]{0}', space=vmem, size = 0x400, scoped, tag = 'input window, operand 8']
    #allocation10 [shape = 's32[2]{0}', space=sflag, size = 0x8, scoped, tag = 'scoped memory for encoder_forward.1']
    #allocation11 [shape = 'u8[32768]{0}', space=vmem, size = 0x8000, scoped, tag = 'input window, operand 9']
    #allocation12 [shape = 'u8[1024]{0}', space=vmem, size = 0x400, scoped, tag = 'input window, operand 10']
    #allocation13 [shape = 's32[2]{0}', space=sflag, size = 0x8, scoped, tag = 'scoped memory for encoder_forward.1']
    #allocation14 [shape = 'u8[32768]{0}', space=vmem, size = 0x8000, scoped, tag = 'input window, operand 13']
    #allocation15 [shape = 'u8[1024]{0}', space=vmem, size = 0x400, scoped, tag = 'input window, operand 14']
    #allocation16 [shape = 's32[2]{0}', space=sflag, size = 0x8, scoped, tag = 'scoped memory for encoder_forward.1']
    #allocation17 [shape = 'u8[1024]{0}', space=vmem, size = 0x400, scoped, tag = 'input window, operand 16']
    #allocation18 [shape = 'u8[8192]{0}', space=vmem, size = 0x2000, scoped, tag = 'output window, operand 0']
    %24 = vsyncpa [#allocation4], 0
    %s25 = scalar_lea.sflag [#allocation4], 1
    %26 = vsyncpa %s25, 0
    %27 = vsyncpa [#allocation7], 0
    %s28 = scalar_lea.sflag [#allocation7], 1
    %29 = vsyncpa %s28, 0
    %30 = vsyncpa [#allocation10], 0
    %s31 = scalar_lea.sflag [#allocation10], 1
    %32 = vsyncpa %s31, 0
    %33 = vsyncpa [#allocation13], 0
    %s34 = scalar_lea.sflag [#allocation13], 1
    %35 = vsyncpa %s34, 0
    %36 = vsyncpa [#allocation16], 0
    %s37 = scalar_lea.sflag [#allocation16], 1
    %38 = vsyncpa %s37, 0
    %39 = vsyncpa [#allocation5], 0
    %s40 = scalar_lea.sflag [#allocation5], 1
    %41 = vsyncpa %s40, 0
    loop: start=0, step=1, limit=6
    $region2: #{encoder_forward.1} parent=1 // loop_pre_header
      _
    $region3: #{encoder_forward.1} parent=1 // loop_header
      %s43 = sphi 0, %s47
      %p44 = scmp.ge.s32.totalorder %s43, 6
      %s50 = sphi 0, %s62
      %s51 = sphi 0, %s58
      %s52 = sphi 0, %s50
      %s53 = sphi 0, %s51
      %s54 = sphi 0, %s52
      %s55 = sphi 0, %s53
      %s65 = sphi 0, %s67
      %s68 = sphi 0, %s65
      %s69 = sphi 0, %s68
      %s85 = sphi 0, %s69
      %s91 = sphi 0, %s93
      %s94 = sphi 0, %s91
      %s95 = sphi 0, %s94
      %s111 = sphi 0, %s95
      %s117 = sphi 0, %s119
      %s120 = sphi 0, %s117
      %s121 = sphi 0, %s120
      %s137 = sphi 0, %s121
      %s143 = sphi 0, %s145
      %s146 = sphi 0, %s143
      %s147 = sphi 0, %s146
      %s163 = sphi 0, %s147
      %s169 = sphi 0, %s171
      %s172 = sphi 0, %s169
      %s173 = sphi 0, %s172
      %s189 = sphi 0, %s173
      %s195 = sphi 0, %s197
      %s198 = sphi 0, %s195
      %s199 = sphi 0, %s198
      %s215 = sphi 0, %s199
      %s221 = sphi 0, %s223
      %s224 = sphi 0, %s221
      %s225 = sphi 0, %s224
      %s241 = sphi 0, %s225
      %s247 = sphi 0, %s249
      %s250 = sphi 0, %s247
      %s251 = sphi 0, %s250
      %s267 = sphi 0, %s251
      %s273 = sphi 0, %s275
      %s276 = sphi 0, %s273
      %s277 = sphi 0, %s276
      %s293 = sphi 0, %s277
      %s299 = sphi 0, %s301
      %s302 = sphi 0, %s299
      %s303 = sphi 0, %s302
      %s319 = sphi 0, %s303
      %s325 = sphi 0, %s327
      %s328 = sphi 0, %s325
      %s329 = sphi 0, %s328
      %s345 = sphi 0, %s329
      %s351 = sphi 0, %s353
      %s354 = sphi 0, %s351
      %s355 = sphi 0, %s354
      %s371 = sphi 0, %s355
      %s377 = sphi 0, %s379
      %s380 = sphi 0, %s377
      %s381 = sphi 0, %s380
      %s397 = sphi 0, %s381
      %s403 = sphi 0, %s405
      %s406 = sphi 0, %s403
      %s407 = sphi 0, %s406
      %s423 = sphi 0, %s407
      %s429 = sphi 0, %s431
      %s432 = sphi 0, %s429
      %s433 = sphi 0, %s432
      %s449 = sphi 0, %s433
      %s455 = sphi 0, %s457
      %s458 = sphi 0, %s455
      %s459 = sphi 0, %s458
      %s475 = sphi 0, %s459
      %s481 = sphi 0, %s483
      %s484 = sphi 0, %s481
      %s485 = sphi 0, %s484
      %s501 = sphi 0, %s485
      %s505 = sphi 0, %s505
      %s507 = sphi 0, %s505
      %s508 = sphi 0, %s507
      %s522 = sphi 0, %s508
      %s526 = sphi 0, %s526
      %s528 = sphi 0, %s526
      %s529 = sphi 0, %s528
      %s543 = sphi 0, %s529
      %s549 = sphi 0, %s551
      %s552 = sphi 0, %s549
      %s553 = sphi 0, %s552
      %s569 = sphi 0, %s553
    $region4: #{encoder_forward.1} parent=1 // loop_header_branch
      %46 = sbr.rel (%p44) target = $region8
    $region5: #{encoder_forward.1} parent=1 // loop_body
      %s48 = ssub.s32 %s43, 1
      %s49 = ssub.s32 %s43, 2
      %s56 = sadd.s32 1, %s51
      %p57 = scmp.ge.s32.totalorder %s56, 2
      %s58 = scalar_select %p57, 0, %s56
      %s59 = sadd.s32 1, %s50
      %s60 = scalar_select %p57, %s59, %s50
      %p61 = scmp.ge.s32.totalorder %s60, 2
      %s62 = scalar_select %p61, 0, %s60
      %s63 = ssub.s32 %s50, %s62
      %p64 = scmp.eq.s32.totalorder %s63, 0
      %s66 = sadd.s32 %s65, 1
      %s67 = scalar_select %p64, %s65, %s66
      %p70 = pneg %p64
      %p71 = scmp.eq.s32.totalorder %s43, 3
      %p72 = por %p70, %p71
      %p73 = scmp.ne.s32.totalorder %s65, %s68
      %p74 = scmp.eq.s32.totalorder %s43, 0
      %p75 = por %p73, %p74
      %p76 = scmp.ne.s32.totalorder %s65, %s68
      %p77 = scmp.eq.s32.totalorder %s48, 3
      %p78 = por %p76, %p77
      %p79 = scmp.ne.s32.totalorder %s68, %s69
      %p80 = scmp.eq.s32.totalorder %s48, 0
      %p81 = por %p79, %p80
      %p82 = scmp.ne.s32.totalorder %s68, %s69
      %p83 = scmp.eq.s32.totalorder %s49, 3
      %p84 = por %p82, %p83
      %p86 = scmp.ne.s32.totalorder %s69, %s85
      %p87 = scmp.eq.s32.totalorder %s49, 0
      %p88 = por %p86, %p87
      %s89 = ssub.s32 %s51, %s58
      %p90 = scmp.eq.s32.totalorder %s89, 0
      %s92 = sadd.s32 %s91, 1
      %s93 = scalar_select %p90, %s91, %s92
      %p96 = pneg %p90
      %p97 = scmp.eq.s32.totalorder %s43, 3
      %p98 = por %p96, %p97
      %p99 = scmp.ne.s32.totalorder %s91, %s94
      %p100 = scmp.eq.s32.totalorder %s43, 0
      %p101 = por %p99, %p100
      %p102 = scmp.ne.s32.totalorder %s91, %s94
      %p103 = scmp.eq.s32.totalorder %s48, 3
      %p104 = por %p102, %p103
      %p105 = scmp.ne.s32.totalorder %s94, %s95
      %p106 = scmp.eq.s32.totalorder %s48, 0
      %p107 = por %p105, %p106
      %p108 = scmp.ne.s32.totalorder %s94, %s95
      %p109 = scmp.eq.s32.totalorder %s49, 3
      %p110 = por %p108, %p109
      %p112 = scmp.ne.s32.totalorder %s95, %s111
      %p113 = scmp.eq.s32.totalorder %s49, 0
      %p114 = por %p112, %p113
      %s115 = ssub.s32 %s51, %s58
      %p116 = scmp.eq.s32.totalorder %s115, 0
      %s118 = sadd.s32 %s117, 1
      %s119 = scalar_select %p116, %s117, %s118
      %p122 = pneg %p116
      %p123 = scmp.eq.s32.totalorder %s43, 3
      %p124 = por %p122, %p123
      %p125 = scmp.ne.s32.totalorder %s117, %s120
      %p126 = scmp.eq.s32.totalorder %s43, 0
      %p127 = por %p125, %p126
      %p128 = scmp.ne.s32.totalorder %s117, %s120
      %p129 = scmp.eq.s32.totalorder %s48, 3
      %p130 = por %p128, %p129
      %p131 = scmp.ne.s32.totalorder %s120, %s121
      %p132 = scmp.eq.s32.totalorder %s48, 0
      %p133 = por %p131, %p132
      %p134 = scmp.ne.s32.totalorder %s120, %s121
      %p135 = scmp.eq.s32.totalorder %s49, 3
      %p136 = por %p134, %p135
      %p138 = scmp.ne.s32.totalorder %s121, %s137
      %p139 = scmp.eq.s32.totalorder %s49, 0
      %p140 = por %p138, %p139
      %s141 = ssub.s32 %s51, %s58
      %p142 = scmp.eq.s32.totalorder %s141, 0
      %s144 = sadd.s32 %s143, 1
      %s145 = scalar_select %p142, %s143, %s144
      %p148 = pneg %p142
      %p149 = scmp.eq.s32.totalorder %s43, 3
      %p150 = por %p148, %p149
      %p151 = scmp.ne.s32.totalorder %s143, %s146
      %p152 = scmp.eq.s32.totalorder %s43, 0
      %p153 = por %p151, %p152
      %p154 = scmp.ne.s32.totalorder %s143, %s146
      %p155 = scmp.eq.s32.totalorder %s48, 3
      %p156 = por %p154, %p155
      %p157 = scmp.ne.s32.totalorder %s146, %s147
      %p158 = scmp.eq.s32.totalorder %s48, 0
      %p159 = por %p157, %p158
      %p160 = scmp.ne.s32.totalorder %s146, %s147
      %p161 = scmp.eq.s32.totalorder %s49, 3
      %p162 = por %p160, %p161
      %p164 = scmp.ne.s32.totalorder %s147, %s163
      %p165 = scmp.eq.s32.totalorder %s49, 0
      %p166 = por %p164, %p165
      %s167 = ssub.s32 %s51, %s58
      %p168 = scmp.eq.s32.totalorder %s167, 0
      %s170 = sadd.s32 %s169, 1
      %s171 = scalar_select %p168, %s169, %s170
      %p174 = pneg %p168
      %p175 = scmp.eq.s32.totalorder %s43, 3
      %p176 = por %p174, %p175
      %p177 = scmp.ne.s32.totalorder %s169, %s172
      %p178 = scmp.eq.s32.totalorder %s43, 0
      %p179 = por %p177, %p178
      %p180 = scmp.ne.s32.totalorder %s169, %s172
      %p181 = scmp.eq.s32.totalorder %s48, 3
      %p182 = por %p180, %p181
      %p183 = scmp.ne.s32.totalorder %s172, %s173
      %p184 = scmp.eq.s32.totalorder %s48, 0
      %p185 = por %p183, %p184
      %p186 = scmp.ne.s32.totalorder %s172, %s173
      %p187 = scmp.eq.s32.totalorder %s49, 3
      %p188 = por %p186, %p187
      %p190 = scmp.ne.s32.totalorder %s173, %s189
      %p191 = scmp.eq.s32.totalorder %s49, 0
      %p192 = por %p190, %p191
      %s193 = ssub.s32 %s51, %s58
      %p194 = scmp.eq.s32.totalorder %s193, 0
      %s196 = sadd.s32 %s195, 1
      %s197 = scalar_select %p194, %s195, %s196
      %p200 = pneg %p194
      %p201 = scmp.eq.s32.totalorder %s43, 3
      %p202 = por %p200, %p201
      %p203 = scmp.ne.s32.totalorder %s195, %s198
      %p204 = scmp.eq.s32.totalorder %s43, 0
      %p205 = por %p203, %p204
      %p206 = scmp.ne.s32.totalorder %s195, %s198
      %p207 = scmp.eq.s32.totalorder %s48, 3
      %p208 = por %p206, %p207
      %p209 = scmp.ne.s32.totalorder %s198, %s199
      %p210 = scmp.eq.s32.totalorder %s48, 0
      %p211 = por %p209, %p210
      %p212 = scmp.ne.s32.totalorder %s198, %s199
      %p213 = scmp.eq.s32.totalorder %s49, 3
      %p214 = por %p212, %p213
      %p216 = scmp.ne.s32.totalorder %s199, %s215
      %p217 = scmp.eq.s32.totalorder %s49, 0
      %p218 = por %p216, %p217
      %s219 = ssub.s32 %s51, %s58
      %p220 = scmp.eq.s32.totalorder %s219, 0
      %s222 = sadd.s32 %s221, 1
      %s223 = scalar_select %p220, %s221, %s222
      %p226 = pneg %p220
      %p227 = scmp.eq.s32.totalorder %s43, 3
      %p228 = por %p226, %p227
      %p229 = scmp.ne.s32.totalorder %s221, %s224
      %p230 = scmp.eq.s32.totalorder %s43, 0
      %p231 = por %p229, %p230
      %p232 = scmp.ne.s32.totalorder %s221, %s224
      %p233 = scmp.eq.s32.totalorder %s48, 3
      %p234 = por %p232, %p233
      %p235 = scmp.ne.s32.totalorder %s224, %s225
      %p236 = scmp.eq.s32.totalorder %s48, 0
      %p237 = por %p235, %p236
      %p238 = scmp.ne.s32.totalorder %s224, %s225
      %p239 = scmp.eq.s32.totalorder %s49, 3
      %p240 = por %p238, %p239
      %p242 = scmp.ne.s32.totalorder %s225, %s241
      %p243 = scmp.eq.s32.totalorder %s49, 0
      %p244 = por %p242, %p243
      %s245 = ssub.s32 %s51, %s58
      %p246 = scmp.eq.s32.totalorder %s245, 0
      %s248 = sadd.s32 %s247, 1
      %s249 = scalar_select %p246, %s247, %s248
      %p252 = pneg %p246
      %p253 = scmp.eq.s32.totalorder %s43, 3
      %p254 = por %p252, %p253
      %p255 = scmp.ne.s32.totalorder %s247, %s250
      %p256 = scmp.eq.s32.totalorder %s43, 0
      %p257 = por %p255, %p256
      %p258 = scmp.ne.s32.totalorder %s247, %s250
      %p259 = scmp.eq.s32.totalorder %s48, 3
      %p260 = por %p258, %p259
      %p261 = scmp.ne.s32.totalorder %s250, %s251
      %p262 = scmp.eq.s32.totalorder %s48, 0
      %p263 = por %p261, %p262
      %p264 = scmp.ne.s32.totalorder %s250, %s251
      %p265 = scmp.eq.s32.totalorder %s49, 3
      %p266 = por %p264, %p265
      %p268 = scmp.ne.s32.totalorder %s251, %s267
      %p269 = scmp.eq.s32.totalorder %s49, 0
      %p270 = por %p268, %p269
      %s271 = ssub.s32 %s51, %s58
      %p272 = scmp.eq.s32.totalorder %s271, 0
      %s274 = sadd.s32 %s273, 1
      %s275 = scalar_select %p272, %s273, %s274
      %p278 = pneg %p272
      %p279 = scmp.eq.s32.totalorder %s43, 3
      %p280 = por %p278, %p279
      %p281 = scmp.ne.s32.totalorder %s273, %s276
      %p282 = scmp.eq.s32.totalorder %s43, 0
      %p283 = por %p281, %p282
      %p284 = scmp.ne.s32.totalorder %s273, %s276
      %p285 = scmp.eq.s32.totalorder %s48, 3
      %p286 = por %p284, %p285
      %p287 = scmp.ne.s32.totalorder %s276, %s277
      %p288 = scmp.eq.s32.totalorder %s48, 0
      %p289 = por %p287, %p288
      %p290 = scmp.ne.s32.totalorder %s276, %s277
      %p291 = scmp.eq.s32.totalorder %s49, 3
      %p292 = por %p290, %p291
      %p294 = scmp.ne.s32.totalorder %s277, %s293
      %p295 = scmp.eq.s32.totalorder %s49, 0
      %p296 = por %p294, %p295
      %s297 = ssub.s32 %s51, %s58
      %p298 = scmp.eq.s32.totalorder %s297, 0
      %s300 = sadd.s32 %s299, 1
      %s301 = scalar_select %p298, %s299, %s300
      %p304 = pneg %p298
      %p305 = scmp.eq.s32.totalorder %s43, 3
      %p306 = por %p304, %p305
      %p307 = scmp.ne.s32.totalorder %s299, %s302
      %p308 = scmp.eq.s32.totalorder %s43, 0
      %p309 = por %p307, %p308
      %p310 = scmp.ne.s32.totalorder %s299, %s302
      %p311 = scmp.eq.s32.totalorder %s48, 3
      %p312 = por %p310, %p311
      %p313 = scmp.ne.s32.totalorder %s302, %s303
      %p314 = scmp.eq.s32.totalorder %s48, 0
      %p315 = por %p313, %p314
      %p316 = scmp.ne.s32.totalorder %s302, %s303
      %p317 = scmp.eq.s32.totalorder %s49, 3
      %p318 = por %p316, %p317
      %p320 = scmp.ne.s32.totalorder %s303, %s319
      %p321 = scmp.eq.s32.totalorder %s49, 0
      %p322 = por %p320, %p321
      %s323 = ssub.s32 %s51, %s58
      %p324 = scmp.eq.s32.totalorder %s323, 0
      %s326 = sadd.s32 %s325, 1
      %s327 = scalar_select %p324, %s325, %s326
      %p330 = pneg %p324
      %p331 = scmp.eq.s32.totalorder %s43, 3
      %p332 = por %p330, %p331
      %p333 = scmp.ne.s32.totalorder %s325, %s328
      %p334 = scmp.eq.s32.totalorder %s43, 0
      %p335 = por %p333, %p334
      %p336 = scmp.ne.s32.totalorder %s325, %s328
      %p337 = scmp.eq.s32.totalorder %s48, 3
      %p338 = por %p336, %p337
      %p339 = scmp.ne.s32.totalorder %s328, %s329
      %p340 = scmp.eq.s32.totalorder %s48, 0
      %p341 = por %p339, %p340
      %p342 = scmp.ne.s32.totalorder %s328, %s329
      %p343 = scmp.eq.s32.totalorder %s49, 3
      %p344 = por %p342, %p343
      %p346 = scmp.ne.s32.totalorder %s329, %s345
      %p347 = scmp.eq.s32.totalorder %s49, 0
      %p348 = por %p346, %p347
      %s349 = ssub.s32 %s51, %s58
      %p350 = scmp.eq.s32.totalorder %s349, 0
      %s352 = sadd.s32 %s351, 1
      %s353 = scalar_select %p350, %s351, %s352
      %p356 = pneg %p350
      %p357 = scmp.eq.s32.totalorder %s43, 3
      %p358 = por %p356, %p357
      %p359 = scmp.ne.s32.totalorder %s351, %s354
      %p360 = scmp.eq.s32.totalorder %s43, 0
      %p361 = por %p359, %p360
      %p362 = scmp.ne.s32.totalorder %s351, %s354
      %p363 = scmp.eq.s32.totalorder %s48, 3
      %p364 = por %p362, %p363
      %p365 = scmp.ne.s32.totalorder %s354, %s355
      %p366 = scmp.eq.s32.totalorder %s48, 0
      %p367 = por %p365, %p366
      %p368 = scmp.ne.s32.totalorder %s354, %s355
      %p369 = scmp.eq.s32.totalorder %s49, 3
      %p370 = por %p368, %p369
      %p372 = scmp.ne.s32.totalorder %s355, %s371
      %p373 = scmp.eq.s32.totalorder %s49, 0
      %p374 = por %p372, %p373
      %s375 = ssub.s32 %s51, %s58
      %p376 = scmp.eq.s32.totalorder %s375, 0
      %s378 = sadd.s32 %s377, 1
      %s379 = scalar_select %p376, %s377, %s378
      %p382 = pneg %p376
      %p383 = scmp.eq.s32.totalorder %s43, 3
      %p384 = por %p382, %p383
      %p385 = scmp.ne.s32.totalorder %s377, %s380
      %p386 = scmp.eq.s32.totalorder %s43, 0
      %p387 = por %p385, %p386
      %p388 = scmp.ne.s32.totalorder %s377, %s380
      %p389 = scmp.eq.s32.totalorder %s48, 3
      %p390 = por %p388, %p389
      %p391 = scmp.ne.s32.totalorder %s380, %s381
      %p392 = scmp.eq.s32.totalorder %s48, 0
      %p393 = por %p391, %p392
      %p394 = scmp.ne.s32.totalorder %s380, %s381
      %p395 = scmp.eq.s32.totalorder %s49, 3
      %p396 = por %p394, %p395
      %p398 = scmp.ne.s32.totalorder %s381, %s397
      %p399 = scmp.eq.s32.totalorder %s49, 0
      %p400 = por %p398, %p399
      %s401 = ssub.s32 %s51, %s58
      %p402 = scmp.eq.s32.totalorder %s401, 0
      %s404 = sadd.s32 %s403, 1
      %s405 = scalar_select %p402, %s403, %s404
      %p408 = pneg %p402
      %p409 = scmp.eq.s32.totalorder %s43, 3
      %p410 = por %p408, %p409
      %p411 = scmp.ne.s32.totalorder %s403, %s406
      %p412 = scmp.eq.s32.totalorder %s43, 0
      %p413 = por %p411, %p412
      %p414 = scmp.ne.s32.totalorder %s403, %s406
      %p415 = scmp.eq.s32.totalorder %s48, 3
      %p416 = por %p414, %p415
      %p417 = scmp.ne.s32.totalorder %s406, %s407
      %p418 = scmp.eq.s32.totalorder %s48, 0
      %p419 = por %p417, %p418
      %p420 = scmp.ne.s32.totalorder %s406, %s407
      %p421 = scmp.eq.s32.totalorder %s49, 3
      %p422 = por %p420, %p421
      %p424 = scmp.ne.s32.totalorder %s407, %s423
      %p425 = scmp.eq.s32.totalorder %s49, 0
      %p426 = por %p424, %p425
      %s427 = ssub.s32 %s51, %s58
      %p428 = scmp.eq.s32.totalorder %s427, 0
      %s430 = sadd.s32 %s429, 1
      %s431 = scalar_select %p428, %s429, %s430
      %p434 = pneg %p428
      %p435 = scmp.eq.s32.totalorder %s43, 3
      %p436 = por %p434, %p435
      %p437 = scmp.ne.s32.totalorder %s429, %s432
      %p438 = scmp.eq.s32.totalorder %s43, 0
      %p439 = por %p437, %p438
      %p440 = scmp.ne.s32.totalorder %s429, %s432
      %p441 = scmp.eq.s32.totalorder %s48, 3
      %p442 = por %p440, %p441
      %p443 = scmp.ne.s32.totalorder %s432, %s433
      %p444 = scmp.eq.s32.totalorder %s48, 0
      %p445 = por %p443, %p444
      %p446 = scmp.ne.s32.totalorder %s432, %s433
      %p447 = scmp.eq.s32.totalorder %s49, 3
      %p448 = por %p446, %p447
      %p450 = scmp.ne.s32.totalorder %s433, %s449
      %p451 = scmp.eq.s32.totalorder %s49, 0
      %p452 = por %p450, %p451
      %s453 = ssub.s32 %s51, %s58
      %p454 = scmp.eq.s32.totalorder %s453, 0
      %s456 = sadd.s32 %s455, 1
      %s457 = scalar_select %p454, %s455, %s456
      %p460 = pneg %p454
      %p461 = scmp.eq.s32.totalorder %s43, 3
      %p462 = por %p460, %p461
      %p463 = scmp.ne.s32.totalorder %s455, %s458
      %p464 = scmp.eq.s32.totalorder %s43, 0
      %p465 = por %p463, %p464
      %p466 = scmp.ne.s32.totalorder %s455, %s458
      %p467 = scmp.eq.s32.totalorder %s48, 3
      %p468 = por %p466, %p467
      %p469 = scmp.ne.s32.totalorder %s458, %s459
      %p470 = scmp.eq.s32.totalorder %s48, 0
      %p471 = por %p469, %p470
      %p472 = scmp.ne.s32.totalorder %s458, %s459
      %p473 = scmp.eq.s32.totalorder %s49, 3
      %p474 = por %p472, %p473
      %p476 = scmp.ne.s32.totalorder %s459, %s475
      %p477 = scmp.eq.s32.totalorder %s49, 0
      %p478 = por %p476, %p477
      %s479 = ssub.s32 %s51, %s58
      %p480 = scmp.eq.s32.totalorder %s479, 0
      %s482 = sadd.s32 %s481, 1
      %s483 = scalar_select %p480, %s481, %s482
      %p486 = pneg %p480
      %p487 = scmp.eq.s32.totalorder %s43, 3
      %p488 = por %p486, %p487
      %p489 = scmp.ne.s32.totalorder %s481, %s484
      %p490 = scmp.eq.s32.totalorder %s43, 0
      %p491 = por %p489, %p490
      %p492 = scmp.ne.s32.totalorder %s481, %s484
      %p493 = scmp.eq.s32.totalorder %s48, 3
      %p494 = por %p492, %p493
      %p495 = scmp.ne.s32.totalorder %s484, %s485
      %p496 = scmp.eq.s32.totalorder %s48, 0
      %p497 = por %p495, %p496
      %p498 = scmp.ne.s32.totalorder %s484, %s485
      %p499 = scmp.eq.s32.totalorder %s49, 3
      %p500 = por %p498, %p499
      %p502 = scmp.ne.s32.totalorder %s485, %s501
      %p503 = scmp.eq.s32.totalorder %s49, 0
      %p504 = por %p502, %p503
      %s506 = sadd.s32 %s505, 1
      %p509 = scmp.eq.s32.totalorder %s43, 3
      %p510 = scmp.ne.s32.totalorder %s505, %s507
      %p511 = scmp.eq.s32.totalorder %s43, 0
      %p512 = por %p510, %p511
      %p513 = scmp.ne.s32.totalorder %s505, %s507
      %p514 = scmp.eq.s32.totalorder %s48, 3
      %p515 = por %p513, %p514
      %p516 = scmp.ne.s32.totalorder %s507, %s508
      %p517 = scmp.eq.s32.totalorder %s48, 0
      %p518 = por %p516, %p517
      %p519 = scmp.ne.s32.totalorder %s507, %s508
      %p520 = scmp.eq.s32.totalorder %s49, 3
      %p521 = por %p519, %p520
      %p523 = scmp.ne.s32.totalorder %s508, %s522
      %p524 = scmp.eq.s32.totalorder %s49, 0
      %p525 = por %p523, %p524
      %s527 = sadd.s32 %s526, 1
      %p530 = scmp.eq.s32.totalorder %s43, 3
      %p531 = scmp.ne.s32.totalorder %s526, %s528
      %p532 = scmp.eq.s32.totalorder %s43, 0
      %p533 = por %p531, %p532
      %p534 = scmp.ne.s32.totalorder %s526, %s528
      %p535 = scmp.eq.s32.totalorder %s48, 3
      %p536 = por %p534, %p535
      %p537 = scmp.ne.s32.totalorder %s528, %s529
      %p538 = scmp.eq.s32.totalorder %s48, 0
      %p539 = por %p537, %p538
      %p540 = scmp.ne.s32.totalorder %s528, %s529
      %p541 = scmp.eq.s32.totalorder %s49, 3
      %p542 = por %p540, %p541
      %p544 = scmp.ne.s32.totalorder %s529, %s543
      %p545 = scmp.eq.s32.totalorder %s49, 0
      %p546 = por %p544, %p545
      %s547 = ssub.s32 %s50, %s62
      %p548 = scmp.eq.s32.totalorder %s547, 0
      %s550 = sadd.s32 %s549, 1
      %s551 = scalar_select %p548, %s549, %s550
      %p554 = pneg %p548
      %p555 = scmp.eq.s32.totalorder %s43, 3
      %p556 = por %p554, %p555
      %p557 = scmp.ne.s32.totalorder %s549, %s552
      %p558 = scmp.eq.s32.totalorder %s43, 0
      %p559 = por %p557, %p558
      %p560 = scmp.ne.s32.totalorder %s549, %s552
      %p561 = scmp.eq.s32.totalorder %s48, 3
      %p562 = por %p560, %p561
      %p563 = scmp.ne.s32.totalorder %s552, %s553
      %p564 = scmp.eq.s32.totalorder %s48, 0
      %p565 = por %p563, %p564
      %p566 = scmp.ne.s32.totalorder %s552, %s553
      %p567 = scmp.eq.s32.totalorder %s49, 3
      %p568 = por %p566, %p567
      %p570 = scmp.ne.s32.totalorder %s553, %s569
      %p571 = scmp.eq.s32.totalorder %s49, 0
      %p572 = por %p570, %p571
      %p573 = scmp.le.s32.totalorder 1, %s43
      %p574 = scmp.lt.s32.totalorder %s43, 5
      %p575 = pnand %p573, %p574
      %p576 = pneg %p575
      // Predicated region
      $region9: #{encoder_forward.1} parent=5 // pred_check
        _
      $region10: #{encoder_forward.1} parent=5 // pred_check_branch
        %578 = sbr.rel (%p575) target = $region12
      $region11: #{encoder_forward.1} parent=5 // pred_region
        %s579 = ssub.s32 %s43, 1
        // Predicated region
        $region13: #{encoder_forward.1} parent=11 // pred_check
          %p580 = pneg %p518
        $region14: #{encoder_forward.1} parent=11 // pred_check_branch
          %582 = sbr.rel (%p580) target = $region16
        $region15: #{encoder_forward.1} parent=11 // pred_region
          _
        $region16: #{encoder_forward.1} parent=11 // pred_fallthru
          _
        // Predicated region
        $region17: #{encoder_forward.1} parent=11 // pred_check
          %p583 = pneg %p539
        $region18: #{encoder_forward.1} parent=11 // pred_check_branch
          %585 = sbr.rel (%p583) target = $region20
        $region19: #{encoder_forward.1} parent=11 // pred_region
          _
        $region20: #{encoder_forward.1} parent=11 // pred_fallthru
          _
      $region12: #{encoder_forward.1} parent=5 // pred_fallthru
        _
      %p586 = scmp.lt.s32.totalorder %s43, 4
      // Predicated region
      $region21: #{encoder_forward.1} parent=5 // pred_check
        %p587 = pneg %p586
      $region22: #{encoder_forward.1} parent=5 // pred_check_branch
        %589 = sbr.rel (%p587) target = $region24
      $region23: #{encoder_forward.1} parent=5 // pred_region
        // Predicated region
        $region25: #{encoder_forward.1} parent=23 // pred_check
          %p590 = pneg %p75
        $region26: #{encoder_forward.1} parent=23 // pred_check_branch
          %592 = sbr.rel (%p590) target = $region28
        $region27: #{encoder_forward.1} parent=23 // pred_region
          %s593 = sand.u32 %s65, 1
          %s594 = scalar_lea.sflag [#allocation4], %s593
          %s595 = sand.u32 %s65, 1
          %s596 = smul.addr %s595, 8
          %s597 = scalar_lea.vmem [#allocation3], %s596
          %599 = vsyncadd %s594, 0
          %s600 = smul.addr %s50, 8
          %s601 = scalar_lea.hbm %s0, %s600
          %s603 = sshll.u32 %s601, 4
          %s604 = int_to_ptr.hbm [resolvable:$true] %s603
          %s605 = sshll.u32 %s597, 4
          %s606 = int_to_ptr.vmem [resolvable:$true] %s605
          %608 = dma.hbm_to_vmem [thread:$0]  %s604, 128, %s606, %s594
        $region28: #{encoder_forward.1} parent=23 // pred_fallthru
          _
        // Predicated region
        $region29: #{encoder_forward.1} parent=23 // pred_check
          %p609 = pneg %p101
        $region30: #{encoder_forward.1} parent=23 // pred_check_branch
          %611 = sbr.rel (%p609) target = $region32
        $region31: #{encoder_forward.1} parent=23 // pred_region
          %p612 = scmp.lt.s32.totalorder %s51, 1
          %s613 = scalar_select %p612, %s51, 1
          %s614 = scalar_lea.vmem %s1, %s613
        $region32: #{encoder_forward.1} parent=23 // pred_fallthru
          _
        // Predicated region
        $region33: #{encoder_forward.1} parent=23 // pred_check
          %p615 = pneg %p127
        $region34: #{encoder_forward.1} parent=23 // pred_check_branch
          %617 = sbr.rel (%p615) target = $region36
        $region35: #{encoder_forward.1} parent=23 // pred_region
          %p618 = scmp.lt.s32.totalorder %s51, 1
          %s619 = scalar_select %p618, %s51, 1
          %s620 = scalar_lea.vmem %s2, %s619
        $region36: #{encoder_forward.1} parent=23 // pred_fallthru
          _
        // Predicated region
        $region37: #{encoder_forward.1} parent=23 // pred_check
          %p621 = pneg %p153
        $region38: #{encoder_forward.1} parent=23 // pred_check_branch
          %623 = sbr.rel (%p621) target = $region40
        $region39: #{encoder_forward.1} parent=23 // pred_region
          %p624 = scmp.lt.s32.totalorder %s51, 1
          %s625 = scalar_select %p624, %s51, 1
          %s626 = smul.addr %s625, 4
          %s627 = smul.addr %s626, 8
          %s628 = scalar_lea.vmem %s3, %s627
        $region40: #{encoder_forward.1} parent=23 // pred_fallthru
          _
        // Predicated region
        $region41: #{encoder_forward.1} parent=23 // pred_check
          %p629 = pneg %p179
        $region42: #{encoder_forward.1} parent=23 // pred_check_branch
          %631 = sbr.rel (%p629) target = $region44
        $region43: #{encoder_forward.1} parent=23 // pred_region
          %s632 = sand.u32 %s43, 1
          %s633 = scalar_lea.sflag [#allocation7], %s632
          %s634 = sand.u32 %s169, 1
          %s635 = scalar_lea.vmem [#allocation6], %s634
          %637 = vsyncadd %s633, 0
          %s638 = scalar_lea.hbm %s4, %s51
          %s640 = sshll.u32 %s638, 4
          %s641 = int_to_ptr.hbm [resolvable:$true] %s640
          %s642 = sshll.u32 %s635, 4
          %s643 = int_to_ptr.vmem [resolvable:$true] %s642
          %645 = dma.hbm_to_vmem [thread:$0]  %s641, 16, %s643, %s633
        $region44: #{encoder_forward.1} parent=23 // pred_fallthru
          _
        // Predicated region
        $region45: #{encoder_forward.1} parent=23 // pred_check
          %p646 = pneg %p205
        $region46: #{encoder_forward.1} parent=23 // pred_check_branch
          %648 = sbr.rel (%p646) target = $region48
        $region47: #{encoder_forward.1} parent=23 // pred_region
          %p649 = scmp.lt.s32.totalorder %s51, 1
          %s650 = scalar_select %p649, %s51, 1
          %s651 = smul.addr %s650, 4
          %s652 = smul.addr %s651, 8
          %s653 = scalar_lea.vmem %s5, %s652
        $region48: #{encoder_forward.1} parent=23 // pred_fallthru
          _
        // Predicated region
        $region49: #{encoder_forward.1} parent=23 // pred_check
          %p654 = pneg %p231
        $region50: #{encoder_forward.1} parent=23 // pred_check_branch
          %656 = sbr.rel (%p654) target = $region52
        $region51: #{encoder_forward.1} parent=23 // pred_region
          %s657 = sand.u32 %s43, 1
          %s658 = scalar_lea.sflag [#allocation7], %s657
          %s659 = sand.u32 %s221, 1
          %s660 = scalar_lea.vmem [#allocation8], %s659
          %662 = vsyncadd %s658, 0
          %s663 = scalar_lea.hbm %s6, %s51
          %s665 = sshll.u32 %s663, 4
          %s666 = int_to_ptr.hbm [resolvable:$true] %s665
          %s667 = sshll.u32 %s660, 4
          %s668 = int_to_ptr.vmem [resolvable:$true] %s667
          %670 = dma.hbm_to_vmem [thread:$0]  %s666, 16, %s668, %s658
        $region52: #{encoder_forward.1} parent=23 // pred_fallthru
          _
        // Predicated region
        $region53: #{encoder_forward.1} parent=23 // pred_check
          %p671 = pneg %p257
        $region54: #{encoder_forward.1} parent=23 // pred_check_branch
          %673 = sbr.rel (%p671) target = $region56
        $region55: #{encoder_forward.1} parent=23 // pred_region
          %p674 = scmp.lt.s32.totalorder %s51, 1
          %s675 = scalar_select %p674, %s51, 1
          %s676 = smul.addr %s675, 4
          %s677 = smul.addr %s676, 8
          %s678 = scalar_lea.vmem %s7, %s677
        $region56: #{encoder_forward.1} parent=23 // pred_fallthru
          _
        // Predicated region
        $region57: #{encoder_forward.1} parent=23 // pred_check
          %p679 = pneg %p283
        $region58: #{encoder_forward.1} parent=23 // pred_check_branch
          %681 = sbr.rel (%p679) target = $region60
        $region59: #{encoder_forward.1} parent=23 // pred_region
          %s682 = sand.u32 %s43, 1
          %s683 = scalar_lea.sflag [#allocation10], %s682
          %s684 = sand.u32 %s273, 1
          %s685 = scalar_lea.vmem [#allocation9], %s684
          %687 = vsyncadd %s683, 0
          %s688 = scalar_lea.hbm %s8, %s51
          %s690 = sshll.u32 %s688, 4
          %s691 = int_to_ptr.hbm [resolvable:$true] %s690
          %s692 = sshll.u32 %s685, 4
          %s693 = int_to_ptr.vmem [resolvable:$true] %s692
          %695 = dma.hbm_to_vmem [thread:$0]  %s691, 16, %s693, %s683
        $region60: #{encoder_forward.1} parent=23 // pred_fallthru
          _
        // Predicated region
        $region61: #{encoder_forward.1} parent=23 // pred_check
          %p696 = pneg %p309
        $region62: #{encoder_forward.1} parent=23 // pred_check_branch
          %698 = sbr.rel (%p696) target = $region64
        $region63: #{encoder_forward.1} parent=23 // pred_region
          %s699 = sand.u32 %s43, 1
          %s700 = scalar_lea.sflag [#allocation10], %s699
          %s701 = sand.u32 %s299, 1
          %s702 = smul.addr %s701, 32
          %s703 = scalar_lea.vmem [#allocation11], %s702
          %705 = vsyncadd %s700, 0
          %s706 = smul.addr %s51, 4
          %s707 = smul.addr %s706, 8
          %s708 = scalar_lea.hbm %s9, %s707
          %s709 = sshll.u32 %s708, 4
          %s710 = int_to_ptr.hbm [resolvable:$true] %s709
          %s711 = sshll.u32 %s703, 4
          %s712 = int_to_ptr.vmem [resolvable:$true] %s711
          %717 = dma.hbm_to_vmem [thread:$0]  %s710, 512, %s712, %s700, 128, 128, 8
        $region64: #{encoder_forward.1} parent=23 // pred_fallthru
          _
        // Predicated region
        $region65: #{encoder_forward.1} parent=23 // pred_check
          %p718 = pneg %p335
        $region66: #{encoder_forward.1} parent=23 // pred_check_branch
          %720 = sbr.rel (%p718) target = $region68
        $region67: #{encoder_forward.1} parent=23 // pred_region
          %s721 = sand.u32 %s43, 1
          %s722 = scalar_lea.sflag [#allocation13], %s721
          %s723 = sand.u32 %s325, 1
          %s724 = scalar_lea.vmem [#allocation12], %s723
          %726 = vsyncadd %s722, 0
          %s727 = scalar_lea.hbm %s10, %s51
          %s729 = sshll.u32 %s727, 4
          %s730 = int_to_ptr.hbm [resolvable:$true] %s729
          %s731 = sshll.u32 %s724, 4
          %s732 = int_to_ptr.vmem [resolvable:$true] %s731
          %734 = dma.hbm_to_vmem [thread:$0]  %s730, 16, %s732, %s722
        $region68: #{encoder_forward.1} parent=23 // pred_fallthru
          _
        // Predicated region
        $region69: #{encoder_forward.1} parent=23 // pred_check
          %p735 = pneg %p361
        $region70: #{encoder_forward.1} parent=23 // pred_check_branch
          %737 = sbr.rel (%p735) target = $region72
        $region71: #{encoder_forward.1} parent=23 // pred_region
          %p738 = scmp.lt.s32.totalorder %s51, 1
          %s739 = scalar_select %p738, %s51, 1
          %s740 = scalar_lea.vmem %s11, %s739
        $region72: #{encoder_forward.1} parent=23 // pred_fallthru
          _
        // Predicated region
        $region73: #{encoder_forward.1} parent=23 // pred_check
          %p741 = pneg %p387
        $region74: #{encoder_forward.1} parent=23 // pred_check_branch
          %743 = sbr.rel (%p741) target = $region76
        $region75: #{encoder_forward.1} parent=23 // pred_region
          %p744 = scmp.lt.s32.totalorder %s51, 1
          %s745 = scalar_select %p744, %s51, 1
          %s746 = scalar_lea.vmem %s12, %s745
        $region76: #{encoder_forward.1} parent=23 // pred_fallthru
          _
        // Predicated region
        $region77: #{encoder_forward.1} parent=23 // pred_check
          %p747 = pneg %p413
        $region78: #{encoder_forward.1} parent=23 // pred_check_branch
          %749 = sbr.rel (%p747) target = $region80
        $region79: #{encoder_forward.1} parent=23 // pred_region
          %s750 = sand.u32 %s43, 1
          %s751 = scalar_lea.sflag [#allocation13], %s750
          %s752 = sand.u32 %s403, 1
          %s753 = smul.addr %s752, 32
          %s754 = scalar_lea.vmem [#allocation14], %s753
          %756 = vsyncadd %s751, 0
          %s757 = smul.addr %s51, 4
          %s758 = smul.addr %s757, 8
          %s759 = scalar_lea.hbm %s13, %s758
          %s760 = sshll.u32 %s759, 4
          %s761 = int_to_ptr.hbm [resolvable:$true] %s760
          %s762 = sshll.u32 %s754, 4
          %s763 = int_to_ptr.vmem [resolvable:$true] %s762
          %768 = dma.hbm_to_vmem [thread:$0]  %s761, 512, %s763, %s751, 128, 128, 8
        $region80: #{encoder_forward.1} parent=23 // pred_fallthru
          _
        // Predicated region
        $region81: #{encoder_forward.1} parent=23 // pred_check
          %p769 = pneg %p439
        $region82: #{encoder_forward.1} parent=23 // pred_check_branch
          %771 = sbr.rel (%p769) target = $region84
        $region83: #{encoder_forward.1} parent=23 // pred_region
          %s772 = sand.u32 %s43, 1
          %s773 = scalar_lea.sflag [#allocation16], %s772
          %s774 = sand.u32 %s429, 1
          %s775 = scalar_lea.vmem [#allocation15], %s774
          %777 = vsyncadd %s773, 0
          %s778 = scalar_lea.hbm %s14, %s51
          %s780 = sshll.u32 %s778, 4
          %s781 = int_to_ptr.hbm [resolvable:$true] %s780
          %s782 = sshll.u32 %s775, 4
          %s783 = int_to_ptr.vmem [resolvable:$true] %s782
          %785 = dma.hbm_to_vmem [thread:$0]  %s781, 16, %s783, %s773
        $region84: #{encoder_forward.1} parent=23 // pred_fallthru
          _
        // Predicated region
        $region85: #{encoder_forward.1} parent=23 // pred_check
          %p786 = pneg %p465
        $region86: #{encoder_forward.1} parent=23 // pred_check_branch
          %788 = sbr.rel (%p786) target = $region88
        $region87: #{encoder_forward.1} parent=23 // pred_region
          %p789 = scmp.lt.s32.totalorder %s51, 1
          %s790 = scalar_select %p789, %s51, 1
          %s791 = smul.addr %s790, 8
          %s792 = smul.addr %s791, 8
          %s793 = scalar_lea.vmem %s15, %s792
        $region88: #{encoder_forward.1} parent=23 // pred_fallthru
          _
        // Predicated region
        $region89: #{encoder_forward.1} parent=23 // pred_check
          %p794 = pneg %p491
        $region90: #{encoder_forward.1} parent=23 // pred_check_branch
          %796 = sbr.rel (%p794) target = $region92
        $region91: #{encoder_forward.1} parent=23 // pred_region
          %s797 = sand.u32 %s43, 1
          %s798 = scalar_lea.sflag [#allocation16], %s797
          %s799 = sand.u32 %s481, 1
          %s800 = scalar_lea.vmem [#allocation17], %s799
          %802 = vsyncadd %s798, 0
          %s803 = scalar_lea.hbm %s16, %s51
          %s805 = sshll.u32 %s803, 4
          %s806 = int_to_ptr.hbm [resolvable:$true] %s805
          %s807 = sshll.u32 %s800, 4
          %s808 = int_to_ptr.vmem [resolvable:$true] %s807
          %810 = dma.hbm_to_vmem [thread:$0]  %s806, 16, %s808, %s798
        $region92: #{encoder_forward.1} parent=23 // pred_fallthru
          _
      $region24: #{encoder_forward.1} parent=5 // pred_fallthru
        _
      %p811 = scmp.le.s32.totalorder 1, %s43
      %p812 = scmp.lt.s32.totalorder %s43, 5
      %p813 = pnand %p811, %p812
      %p814 = pneg %p813
      // Predicated region
      $region93: #{encoder_forward.1} parent=5 // pred_check
        _
      $region94: #{encoder_forward.1} parent=5 // pred_check_branch
        %816 = sbr.rel (%p813) target = $region96
      $region95: #{encoder_forward.1} parent=5 // pred_region
        %s817 = ssub.s32 %s43, 1
        %s818 = sand.u32 %s68, 1
        %s819 = scalar_lea.sflag [#allocation4], %s818
        %s820 = sand.u32 %s68, 1
        %s821 = smul.addr %s820, 8
        %s822 = scalar_lea.vmem [#allocation3], %s821
        // Predicated region
        $region97: #{encoder_forward.1} parent=95 // pred_check
          %p823 = pneg %p81
        $region98: #{encoder_forward.1} parent=95 // pred_check_branch
          %825 = sbr.rel (%p823) target = $region100
        $region99: #{encoder_forward.1} parent=95 // pred_region
          %827 = dma.done %s819, 128
        $region100: #{encoder_forward.1} parent=95 // pred_fallthru
          _
        %s828 = sand.u32 %s48, 1
        %s829 = scalar_lea.sflag [#allocation7], %s828
        %s830 = sand.u32 %s172, 1
        %s831 = scalar_lea.vmem [#allocation6], %s830
        // Predicated region
        $region101: #{encoder_forward.1} parent=95 // pred_check
          %p832 = pneg %p185
        $region102: #{encoder_forward.1} parent=95 // pred_check_branch
          %834 = sbr.rel (%p832) target = $region104
        $region103: #{encoder_forward.1} parent=95 // pred_region
          %836 = dma.done %s829, 16
        $region104: #{encoder_forward.1} parent=95 // pred_fallthru
          _
        %s837 = sand.u32 %s48, 1
        %s838 = scalar_lea.sflag [#allocation7], %s837
        %s839 = sand.u32 %s224, 1
        %s840 = scalar_lea.vmem [#allocation8], %s839
        // Predicated region
        $region105: #{encoder_forward.1} parent=95 // pred_check
          %p841 = pneg %p237
        $region106: #{encoder_forward.1} parent=95 // pred_check_branch
          %843 = sbr.rel (%p841) target = $region108
        $region107: #{encoder_forward.1} parent=95 // pred_region
          %845 = dma.done %s838, 16
        $region108: #{encoder_forward.1} parent=95 // pred_fallthru
          _
        %s846 = sand.u32 %s48, 1
        %s847 = scalar_lea.sflag [#allocation10], %s846
        %s848 = sand.u32 %s276, 1
        %s849 = scalar_lea.vmem [#allocation9], %s848
        // Predicated region
        $region109: #{encoder_forward.1} parent=95 // pred_check
          %p850 = pneg %p289
        $region110: #{encoder_forward.1} parent=95 // pred_check_branch
          %852 = sbr.rel (%p850) target = $region112
        $region111: #{encoder_forward.1} parent=95 // pred_region
          %854 = dma.done %s847, 16
        $region112: #{encoder_forward.1} parent=95 // pred_fallthru
          _
        %s855 = sand.u32 %s48, 1
        %s856 = scalar_lea.sflag [#allocation10], %s855
        %s857 = sand.u32 %s302, 1
        %s858 = smul.addr %s857, 32
        %s859 = scalar_lea.vmem [#allocation11], %s858
        // Predicated region
        $region113: #{encoder_forward.1} parent=95 // pred_check
          %p860 = pneg %p315
        $region114: #{encoder_forward.1} parent=95 // pred_check_branch
          %862 = sbr.rel (%p860) target = $region116
        $region115: #{encoder_forward.1} parent=95 // pred_region
          %864 = dma.done %s856, 512
        $region116: #{encoder_forward.1} parent=95 // pred_fallthru
          _
        %s865 = sand.u32 %s48, 1
        %s866 = scalar_lea.sflag [#allocation13], %s865
        %s867 = sand.u32 %s328, 1
        %s868 = scalar_lea.vmem [#allocation12], %s867
        // Predicated region
        $region117: #{encoder_forward.1} parent=95 // pred_check
          %p869 = pneg %p341
        $region118: #{encoder_forward.1} parent=95 // pred_check_branch
          %871 = sbr.rel (%p869) target = $region120
        $region119: #{encoder_forward.1} parent=95 // pred_region
          %873 = dma.done %s866, 16
        $region120: #{encoder_forward.1} parent=95 // pred_fallthru
          _
        %s874 = sand.u32 %s48, 1
        %s875 = scalar_lea.sflag [#allocation13], %s874
        %s876 = sand.u32 %s406, 1
        %s877 = smul.addr %s876, 32
        %s878 = scalar_lea.vmem [#allocation14], %s877
        // Predicated region
        $region121: #{encoder_forward.1} parent=95 // pred_check
          %p879 = pneg %p419
        $region122: #{encoder_forward.1} parent=95 // pred_check_branch
          %881 = sbr.rel (%p879) target = $region124
        $region123: #{encoder_forward.1} parent=95 // pred_region
          %883 = dma.done %s875, 512
        $region124: #{encoder_forward.1} parent=95 // pred_fallthru
          _
        %s884 = sand.u32 %s48, 1
        %s885 = scalar_lea.sflag [#allocation16], %s884
        %s886 = sand.u32 %s432, 1
        %s887 = scalar_lea.vmem [#allocation15], %s886
        // Predicated region
        $region125: #{encoder_forward.1} parent=95 // pred_check
          %p888 = pneg %p445
        $region126: #{encoder_forward.1} parent=95 // pred_check_branch
          %890 = sbr.rel (%p888) target = $region128
        $region127: #{encoder_forward.1} parent=95 // pred_region
          %892 = dma.done %s885, 16
        $region128: #{encoder_forward.1} parent=95 // pred_fallthru
          _
        %s893 = sand.u32 %s48, 1
        %s894 = scalar_lea.sflag [#allocation16], %s893
        %s895 = sand.u32 %s484, 1
        %s896 = scalar_lea.vmem [#allocation17], %s895
        // Predicated region
        $region129: #{encoder_forward.1} parent=95 // pred_check
          %p897 = pneg %p497
        $region130: #{encoder_forward.1} parent=95 // pred_check_branch
          %899 = sbr.rel (%p897) target = $region132
        $region131: #{encoder_forward.1} parent=95 // pred_region
          %901 = dma.done %s894, 16
        $region132: #{encoder_forward.1} parent=95 // pred_fallthru
          _
        %s902 = sand.u32 %s68, 1
        %s903 = scalar_lea.sflag [#allocation4], %s902
        %s904 = sand.u32 %s68, 1
        %s905 = smul.addr %s904, 8
        %s906 = scalar_lea.vmem [#allocation3], %s905
        %p907 = pneg %p81
        %p908 = pneg %p78
        %p909 = scmp.lt.s32.totalorder %s53, 1
        %s910 = scalar_select %p909, %s53, 1
        %s911 = scalar_lea.vmem %s1, %s910
        %p912 = pneg %p107
        %p913 = pneg %p104
        %p914 = scmp.lt.s32.totalorder %s53, 1
        %s915 = scalar_select %p914, %s53, 1
        %s916 = scalar_lea.vmem %s2, %s915
        %p917 = pneg %p133
        %p918 = pneg %p130
        %p919 = scmp.lt.s32.totalorder %s53, 1
        %s920 = scalar_select %p919, %s53, 1
        %s921 = smul.addr %s920, 4
        %s922 = smul.addr %s921, 8
        %s923 = scalar_lea.vmem %s3, %s922
        %p924 = pneg %p159
        %p925 = pneg %p156
        %s926 = sand.u32 %s48, 1
        %s927 = scalar_lea.sflag [#allocation7], %s926
        %s928 = sand.u32 %s172, 1
        %s929 = scalar_lea.vmem [#allocation6], %s928
        %p930 = pneg %p185
        %p931 = pneg %p182
        %p932 = scmp.lt.s32.totalorder %s53, 1
        %s933 = scalar_select %p932, %s53, 1
        %s934 = smul.addr %s933, 4
        %s935 = smul.addr %s934, 8
        %s936 = scalar_lea.vmem %s5, %s935
        %p937 = pneg %p211
        %p938 = pneg %p208
        %s939 = sand.u32 %s48, 1
        %s940 = scalar_lea.sflag [#allocation7], %s939
        %s941 = sand.u32 %s224, 1
        %s942 = scalar_lea.vmem [#allocation8], %s941
        %p943 = pneg %p237
        %p944 = pneg %p234
        %p945 = scmp.lt.s32.totalorder %s53, 1
        %s946 = scalar_select %p945, %s53, 1
        %s947 = smul.addr %s946, 4
        %s948 = smul.addr %s947, 8
        %s949 = scalar_lea.vmem %s7, %s948
        %p950 = pneg %p263
        %p951 = pneg %p260
        %s952 = sand.u32 %s48, 1
        %s953 = scalar_lea.sflag [#allocation10], %s952
        %s954 = sand.u32 %s276, 1
        %s955 = scalar_lea.vmem [#allocation9], %s954
        %p956 = pneg %p289
        %p957 = pneg %p286
        %s958 = sand.u32 %s48, 1
        %s959 = scalar_lea.sflag [#allocation10], %s958
        %s960 = sand.u32 %s302, 1
        %s961 = smul.addr %s960, 32
        %s962 = scalar_lea.vmem [#allocation11], %s961
        %p963 = pneg %p315
        %p964 = pneg %p312
        %s965 = sand.u32 %s48, 1
        %s966 = scalar_lea.sflag [#allocation13], %s965
        %s967 = sand.u32 %s328, 1
        %s968 = scalar_lea.vmem [#allocation12], %s967
        %p969 = pneg %p341
        %p970 = pneg %p338
        %p971 = scmp.lt.s32.totalorder %s53, 1
        %s972 = scalar_select %p971, %s53, 1
        %s973 = scalar_lea.vmem %s11, %s972
        %p974 = pneg %p367
        %p975 = pneg %p364
        %p976 = scmp.lt.s32.totalorder %s53, 1
        %s977 = scalar_select %p976, %s53, 1
        %s978 = scalar_lea.vmem %s12, %s977
        %p979 = pneg %p393
        %p980 = pneg %p390
        %s981 = sand.u32 %s48, 1
        %s982 = scalar_lea.sflag [#allocation13], %s981
        %s983 = sand.u32 %s406, 1
        %s984 = smul.addr %s983, 32
        %s985 = scalar_lea.vmem [#allocation14], %s984
        %p986 = pneg %p419
        %p987 = pneg %p416
        %s988 = sand.u32 %s48, 1
        %s989 = scalar_lea.sflag [#allocation16], %s988
        %s990 = sand.u32 %s432, 1
        %s991 = scalar_lea.vmem [#allocation15], %s990
        %p992 = pneg %p445
        %p993 = pneg %p442
        %p994 = scmp.lt.s32.totalorder %s53, 1
        %s995 = scalar_select %p994, %s53, 1
        %s996 = smul.addr %s995, 8
        %s997 = smul.addr %s996, 8
        %s998 = scalar_lea.vmem %s15, %s997
        %p999 = pneg %p471
        %p1000 = pneg %p468
        %s1001 = sand.u32 %s48, 1
        %s1002 = scalar_lea.sflag [#allocation16], %s1001
        %s1003 = sand.u32 %s484, 1
        %s1004 = scalar_lea.vmem [#allocation17], %s1003
        %p1005 = pneg %p497
        %p1006 = pneg %p494
        %p1007 = pneg %p518
        %p1008 = pneg %p515
        %p1009 = pneg %p539
        %p1010 = pneg %p536
        %p1011 = pneg %p565
        %p1012 = pneg %p562
        %s1013 = sand.u32 %s552, 1
        %s1014 = scalar_lea.sflag [#allocation5], %s1013
        %s1015 = sand.u32 %s552, 1
        %s1016 = smul.addr %s1015, 8
        %s1017 = scalar_lea.vmem [#allocation18], %s1016
        %p1018 = scmp.lt.s32.totalorder %s53, 1
        %s1019 = scalar_select %p1018, %s53, 1
        %s1020 = scalar_lea.vmem %s1, %s1019
        %p1021 = scmp.lt.s32.totalorder %s53, 1
        %s1022 = scalar_select %p1021, %s53, 1
        %s1023 = scalar_lea.vmem %s2, %s1022
        %p1024 = scmp.lt.s32.totalorder %s53, 1
        %s1025 = scalar_select %p1024, %s53, 1
        %s1026 = smul.addr %s1025, 4
        %s1027 = smul.addr %s1026, 8
        %s1028 = scalar_lea.vmem %s3, %s1027
        %p1029 = scmp.lt.s32.totalorder %s53, 1
        %s1030 = scalar_select %p1029, %s53, 1
        %s1031 = smul.addr %s1030, 4
        %s1032 = smul.addr %s1031, 8
        %s1033 = scalar_lea.vmem %s5, %s1032
        %p1034 = scmp.lt.s32.totalorder %s53, 1
        %s1035 = scalar_select %p1034, %s53, 1
        %s1036 = smul.addr %s1035, 4
        %s1037 = smul.addr %s1036, 8
        %s1038 = scalar_lea.vmem %s7, %s1037
        %p1039 = scmp.lt.s32.totalorder %s53, 1
        %s1040 = scalar_select %p1039, %s53, 1
        %s1041 = scalar_lea.vmem %s11, %s1040
        %p1042 = scmp.lt.s32.totalorder %s53, 1
        %s1043 = scalar_select %p1042, %s53, 1
        %s1044 = scalar_lea.vmem %s12, %s1043
        %p1045 = scmp.lt.s32.totalorder %s53, 1
        %s1046 = scalar_select %p1045, %s53, 1
        %s1047 = smul.addr %s1046, 8
        %s1048 = smul.addr %s1047, 8
        %s1049 = scalar_lea.vmem %s15, %s1048
        %p1050 = scmp.eq.s32.totalorder %s53, 0
        // Predicated region
        $region133: #{encoder_forward.1} parent=95 // pred_check
          %p1051 = pneg %p1050
        $region134: #{encoder_forward.1} parent=95 // pred_check_branch
          %1053 = sbr.rel (%p1051) target = $region136
        $region135: #{encoder_forward.1} parent=95 // pred_region
          %v1054 = vld [vmem:[%s822] sm:$0xff]
          %vm1055 = vcmask 261120
          %1056 = vst.msk [vmem:[#allocation2] sm:$0xff] %vm1055, %v1054
        $region136: #{encoder_forward.1} parent=95 // pred_fallthru
          _
        %v1057 = vld [vmem:[#allocation2] sm:$0xff]
        %v1058 = vld [vmem:[%s1020] sm:$0x1]
        %v1059 = vld [vmem:[%s1023] sm:$0x1]
        %vm1060 = vcmask 261120
        %v1061 = vsel %vm1060, %v1057, 0.0
        %1062 = vadd.xlane.f32.xlu0 %v1061
        %v1063 = vpop.xlane.xlu0 %1062
        %v1064 = vrcp.pop 32.0
        %v1065 = vmul.f32 32.0, %v1064
        %v1066 = vsub.f32 1.0, %v1065
        %v1067 = vmul.f32 %v1064, %v1066
        %v1068 = vadd.f32 %v1064, %v1067
        %vm1069 = vweird.f32 %v1064
        %v1070 = vsel %vm1069, %v1064, %v1068
        %v1071 = vmul.f32 %v1063, %v1070
        %v1072 = vmul.f32 %v1057, %v1057
        %v1073 = vsel %vm1060, %v1072, 0.0
        %1074 = vadd.xlane.f32.xlu0 %v1073
        %v1075 = vpop.xlane.xlu0 %1074
        %v1076 = vmul.f32 %v1075, %v1070
        %v1077 = vmul.f32 %v1071, %v1071
        %v1078 = vsub.f32 %v1076, %v1077
        %v1079 = vmul.f32 %v1078, 1.032258
        %v1080 = vmax.f32 %v1079, 0.0
        %v1081 = vrsqrt.pop %v1080
        %v1082 = vmul.f32 %v1081, %v1080
        %v1083 = vmul.f32 %v1082, %v1081
        %v1084 = vmul.f32 0.5, %v1083
        %v1085 = vsub.f32 1.5, %v1084
        %v1086 = vmul.f32 %v1081, %v1085
        %v1087 = vmul.f32 %v1080, %v1086
        %vm1088 = vcmp.eq.f32.partialorder %v1080, inf
        %v1089 = vsel %vm1088, %v1080, %v1087
        %vm1090 = vcmp.eq.f32.partialorder %v1080, 0.0
        %v1091 = vand.u32 %v1080, 2147483648
        %v1092 = vsel %vm1090, %v1091, %v1089
        %v1093 = vsub.f32 %v1057, %v1071
        %v1094 = vadd.f32 %v1092, 1e-06
        %v1095 = vrcp.pop %v1094
        %v1096 = vmul.f32 %v1094, %v1095
        %v1097 = vsub.f32 1.0, %v1096
        %v1098 = vmul.f32 %v1095, %v1097
        %v1099 = vadd.f32 %v1095, %v1098
        %vm1100 = vweird.f32 %v1094
        %vm1101 = vweird.f32 %v1095
        %vm1102 = vmor %vm1100, %vm1101
        %v1103 = vsel %vm1102, %v1095, %v1099
        %v1104 = vand.u32 2147483647, %v1094
        %vm1105 = vcmp.eq.f32.partialorder %v1104, 8.507059e+37
        %v1106 = vand.u32 %v1094, 2147483648
        %v1107 = vor.u32 1.1754944e-38, %v1106
        %v1108 = vsel %vm1105, %v1107, %v1103
        %v1109 = vmul.f32 %v1093, %v1108
        %v1111 = vperm.slane %v1058, 0
        %v1113 = vmul.f32 %v1111, %v1109
        %v1115 = vperm.slane %v1059, 0
        %v1117 = vadd.f32 %v1113, %v1115
        %v1118 = vld [vmem:[%s1028] sm:$0xff]
        %v1119 = vld [vmem:[%s1028 + $0x8] sm:$0xff]
        %v1120 = vld [vmem:[%s1028 + $0x10] sm:$0xff]
        %v1121 = vld [vmem:[%s1028 + $0x18] sm:$0xff]
        %v1122 = vld [vmem:[%s831] sm:$0x1]
        %v1124 = vperm.slane %v1122, 0
        %v1127 = vsel %vm1060, %v1117, 0
        %1129 = vmatpush.msra.mxu0 0.0
        %1130 = vmatpush.msra.mxu0 0.0
        %1131 = vmatpush.msra.mxu0 0.0
        %1132 = vmatpush.msra.mxu0 0.0
        %1133 = vmatpush.msra.mxu0 0.0
        %1134 = vmatpush.msra.mxu0 0.0
        %1135 = vmatpush.msra.mxu0 0.0
        %1136 = vmatpush.msra.mxu0 0.0
        %1137 = vmatpush.msra.mxu0 0.0
        %1138 = vmatpush.msra.mxu0 0.0
        %1139 = vmatpush.msra.mxu0 0.0
        %1140 = vmatpush.msra.mxu0 0.0
        %1141 = vmatpush.msra.mxu0 %v1121
        %1142 = vmatpush.msra.mxu0 %v1120
        %1143 = vmatpush.msra.mxu0 %v1119
        %1144 = vmatpush.msra.mxu0 %v1118
        %1145 = vmatmul.f32.gmra.mxu0 %v1127
        %v1146 = vpop.f32.mrf.mxu0
        %v1147 = vadd.f32 %v1124, %v1146
        %1148 = vdwg.mxu0
        %v1149 = vld [vmem:[%s1033] sm:$0xff]
        %v1150 = vld [vmem:[%s1033 + $0x8] sm:$0xff]
        %v1151 = vld [vmem:[%s1033 + $0x10] sm:$0xff]
        %v1152 = vld [vmem:[%s1033 + $0x18] sm:$0xff]
        %v1153 = vld [vmem:[%s840] sm:$0x1]
        %v1155 = vperm.slane %v1153, 0
        %1157 = vmatpush.msra.mxu0 0.0
        %1158 = vmatpush.msra.mxu0 0.0
        %1159 = vmatpush.msra.mxu0 0.0
        %1160 = vmatpush.msra.mxu0 0.0
        %1161 = vmatpush.msra.mxu0 0.0
        %1162 = vmatpush.msra.mxu0 0.0
        %1163 = vmatpush.msra.mxu0 0.0
        %1164 = vmatpush.msra.mxu0 0.0
        %1165 = vmatpush.msra.mxu0 0.0
        %1166 = vmatpush.msra.mxu0 0.0
        %1167 = vmatpush.msra.mxu0 0.0
        %1168 = vmatpush.msra.mxu0 0.0
        %1169 = vmatpush.msra.mxu0 %v1152
        %1170 = vmatpush.msra.mxu0 %v1151
        %1171 = vmatpush.msra.mxu0 %v1150
        %1172 = vmatpush.msra.mxu0 %v1149
        %1173 = vmatmul.f32.gmra.mxu0 %v1127
        %v1174 = vpop.f32.mrf.mxu0
        %v1175 = vadd.f32 %v1155, %v1174
        %1176 = vdwg.mxu0
        %v1177 = vld [vmem:[%s1038] sm:$0xff]
        %v1178 = vld [vmem:[%s1038 + $0x8] sm:$0xff]
        %v1179 = vld [vmem:[%s1038 + $0x10] sm:$0xff]
        %v1180 = vld [vmem:[%s1038 + $0x18] sm:$0xff]
        %v1181 = vld [vmem:[%s849] sm:$0x1]
        %v1183 = vperm.slane %v1181, 0
        %1185 = vmatpush.msra.mxu0 0.0
        %1186 = vmatpush.msra.mxu0 0.0
        %1187 = vmatpush.msra.mxu0 0.0
        %1188 = vmatpush.msra.mxu0 0.0
        %1189 = vmatpush.msra.mxu0 0.0
        %1190 = vmatpush.msra.mxu0 0.0
        %1191 = vmatpush.msra.mxu0 0.0
        %1192 = vmatpush.msra.mxu0 0.0
        %1193 = vmatpush.msra.mxu0 0.0
        %1194 = vmatpush.msra.mxu0 0.0
        %1195 = vmatpush.msra.mxu0 0.0
        %1196 = vmatpush.msra.mxu0 0.0
        %1197 = vmatpush.msra.mxu0 %v1180
        %1198 = vmatpush.msra.mxu0 %v1179
        %1199 = vmatpush.msra.mxu0 %v1178
        %1200 = vmatpush.msra.mxu0 %v1177
        %1201 = vmatmul.f32.gmra.mxu0 %v1127
        %v1202 = vpop.f32.mrf.mxu0
        %v1203 = vadd.f32 %v1183, %v1202
        %1204 = vdwg.mxu0
        %vm1205 = vcmask 64512
        %v1207 = vsel %vm1205, %v1147, 0
        %v1210 = vsel %vm1205, %v1175, 0
        %1212 = vmatpush.xpose.msra.mxu0 0.0
        %1213 = vmatpush.xpose.msra.mxu0 0.0
        %1214 = vmatpush.xpose.msra.mxu0 0.0
        %1215 = vmatpush.xpose.msra.mxu0 0.0
        %1216 = vmatpush.xpose.msra.mxu0 0.0
        %1217 = vmatpush.xpose.msra.mxu0 0.0
        %1218 = vmatpush.xpose.msra.mxu0 0.0
        %1219 = vmatpush.xpose.msra.mxu0 0.0
        %1220 = vmatpush.xpose.msra.mxu0 0.0
        %1221 = vmatpush.xpose.msra.mxu0 0.0
        %1222 = vmatpush.xpose.msra.mxu0 0.0
        %1223 = vmatpush.xpose.msra.mxu0 0.0
        %1224 = vmatpush.xpose.msra.mxu0 0.0
        %1225 = vmatpush.xpose.msra.mxu0 0.0
        %1226 = vmatpush.xpose.msra.mxu0 0.0
        %1227 = vmatpush.xpose.msra.mxu0 %v1210
        %1228 = vmatmul.f32.gmra.mxu0 %v1207
        %v1229 = vpop.f32.mrf.mxu0
        %v1230 = vadd.f32 0.0, %v1229
        %1231 = vdwg.mxu0
        %v1232 = vmul.f32 %v1230, 0.35355338
        %v1233 = vsel %vm1205, %v1232, -inf
        %1234 = vmax.xlane.f32.xlu0 %v1233
        %v1235 = vpop.xlane.xlu0 %1234
        %v1236 = vsub.f32 %v1232, %v1235
        %v1237 = vmul.f32 %v1236, 1.442695
        %v1238 = vpow.pop %v1237
        %v1239 = vsel %vm1205, %v1238, 0.0
        %1240 = vadd.xlane.f32.xlu0 %v1239
        %v1241 = vpop.xlane.xlu0 %1240
        %v1242 = vrcp.pop %v1241
        %v1243 = vmul.f32 %v1238, %v1242
        %v1245 = vsel %vm1205, %v1243, 0
        %1247 = vmatpush.msra.mxu0 0.0
        %1248 = vmatpush.msra.mxu0 0.0
        %1249 = vmatpush.msra.mxu0 0.0
        %1250 = vmatpush.msra.mxu0 0.0
        %1251 = vmatpush.msra.mxu0 0.0
        %1252 = vmatpush.msra.mxu0 0.0
        %1253 = vmatpush.msra.mxu0 0.0
        %1254 = vmatpush.msra.mxu0 0.0
        %1255 = vmatpush.msra.mxu0 0.0
        %1256 = vmatpush.msra.mxu0 0.0
        %1257 = vmatpush.msra.mxu0 0.0
        %1258 = vmatpush.msra.mxu0 0.0
        %1259 = vmatpush.msra.mxu0 0.0
        %1260 = vmatpush.msra.mxu0 0.0
        %1261 = vmatpush.msra.mxu0 0.0
        %1262 = vmatpush.msra.mxu0 %v1203
        %1263 = vmatmul.f32.gmra.mxu0 %v1245
        %v1264 = vpop.f32.mrf.mxu0
        %v1265 = vadd.f32 0.0, %v1264
        %1266 = vdwg.mxu0
        %1267 = vrot.lane.b32.xlu0 %v1147, 120
        %v1268 = vpop.permute.xlu0 %1267
        %1269 = vrot.lane.b32.xlu0 %v1175, 120
        %v1270 = vpop.permute.xlu0 %1269
        %v1271 = vsel %vm1205, %v1268, 0
        %v1273 = vsel %vm1205, %v1270, 0
        %1275 = vmatpush.xpose.msra.mxu0 0.0
        %1276 = vmatpush.xpose.msra.mxu0 0.0
        %1277 = vmatpush.xpose.msra.mxu0 0.0
        %1278 = vmatpush.xpose.msra.mxu0 0.0
        %1279 = vmatpush.xpose.msra.mxu0 0.0
        %1280 = vmatpush.xpose.msra.mxu0 0.0
        %1281 = vmatpush.xpose.msra.mxu0 0.0
        %1282 = vmatpush.xpose.msra.mxu0 0.0
        %1283 = vmatpush.xpose.msra.mxu0 0.0
        %1284 = vmatpush.xpose.msra.mxu0 0.0
        %1285 = vmatpush.xpose.msra.mxu0 0.0
        %1286 = vmatpush.xpose.msra.mxu0 0.0
        %1287 = vmatpush.xpose.msra.mxu0 0.0
        %1288 = vmatpush.xpose.msra.mxu0 0.0
        %1289 = vmatpush.xpose.msra.mxu0 0.0
        %1290 = vmatpush.xpose.msra.mxu0 %v1273
        %1291 = vmatmul.f32.gmra.mxu0 %v1271
        %v1292 = vpop.f32.mrf.mxu0
        %v1293 = vadd.f32 0.0, %v1292
        %1294 = vdwg.mxu0
        %v1295 = vmul.f32 %v1293, 0.35355338
        %v1296 = vsel %vm1205, %v1295, -inf
        %1297 = vmax.xlane.f32.xlu0 %v1296
        %v1298 = vpop.xlane.xlu0 %1297
        %v1299 = vsub.f32 %v1295, %v1298
        %v1300 = vmul.f32 %v1299, 1.442695
        %v1301 = vpow.pop %v1300
        %v1302 = vsel %vm1205, %v1301, 0.0
        %1303 = vadd.xlane.f32.xlu0 %v1302
        %v1304 = vpop.xlane.xlu0 %1303
        %v1305 = vrcp.pop %v1304
        %v1306 = vmul.f32 %v1301, %v1305
        %1308 = vrot.lane.b32.xlu0 %v1203, 120
        %v1309 = vpop.permute.xlu0 %1308
        %v1312 = vsel %vm1205, %v1306, 0
        %1314 = vmatpush.msra.mxu0 0.0
        %1315 = vmatpush.msra.mxu0 0.0
        %1316 = vmatpush.msra.mxu0 0.0
        %1317 = vmatpush.msra.mxu0 0.0
        %1318 = vmatpush.msra.mxu0 0.0
        %1319 = vmatpush.msra.mxu0 0.0
        %1320 = vmatpush.msra.mxu0 0.0
        %1321 = vmatpush.msra.mxu0 0.0
        %1322 = vmatpush.msra.mxu0 0.0
        %1323 = vmatpush.msra.mxu0 0.0
        %1324 = vmatpush.msra.mxu0 0.0
        %1325 = vmatpush.msra.mxu0 0.0
        %1326 = vmatpush.msra.mxu0 0.0
        %1327 = vmatpush.msra.mxu0 0.0
        %1328 = vmatpush.msra.mxu0 0.0
        %1329 = vmatpush.msra.mxu0 %v1309
        %1330 = vmatmul.f32.gmra.mxu0 %v1312
        %v1331 = vpop.f32.mrf.mxu0
        %v1332 = vadd.f32 0.0, %v1331
        %1333 = vdwg.mxu0
        %1334 = vrot.lane.b32.xlu0 %v1147, 112
        %v1335 = vpop.permute.xlu0 %1334
        %1336 = vrot.lane.b32.xlu0 %v1175, 112
        %v1337 = vpop.permute.xlu0 %1336
        %v1338 = vsel %vm1205, %v1335, 0
        %v1340 = vsel %vm1205, %v1337, 0
        %1342 = vmatpush.xpose.msra.mxu0 0.0
        %1343 = vmatpush.xpose.msra.mxu0 0.0
        %1344 = vmatpush.xpose.msra.mxu0 0.0
        %1345 = vmatpush.xpose.msra.mxu0 0.0
        %1346 = vmatpush.xpose.msra.mxu0 0.0
        %1347 = vmatpush.xpose.msra.mxu0 0.0
        %1348 = vmatpush.xpose.msra.mxu0 0.0
        %1349 = vmatpush.xpose.msra.mxu0 0.0
        %1350 = vmatpush.xpose.msra.mxu0 0.0
        %1351 = vmatpush.xpose.msra.mxu0 0.0
        %1352 = vmatpush.xpose.msra.mxu0 0.0
        %1353 = vmatpush.xpose.msra.mxu0 0.0
        %1354 = vmatpush.xpose.msra.mxu0 0.0
        %1355 = vmatpush.xpose.msra.mxu0 0.0
        %1356 = vmatpush.xpose.msra.mxu0 0.0
        %1357 = vmatpush.xpose.msra.mxu0 %v1340
        %1358 = vmatmul.f32.gmra.mxu0 %v1338
        %v1359 = vpop.f32.mrf.mxu0
        %v1360 = vadd.f32 0.0, %v1359
        %1361 = vdwg.mxu0
        %v1362 = vmul.f32 %v1360, 0.35355338
        %v1363 = vsel %vm1205, %v1362, -inf
        %1364 = vmax.xlane.f32.xlu0 %v1363
        %v1365 = vpop.xlane.xlu0 %1364
        %v1366 = vsub.f32 %v1362, %v1365
        %v1367 = vmul.f32 %v1366, 1.442695
        %v1368 = vpow.pop %v1367
        %v1369 = vsel %vm1205, %v1368, 0.0
        %1370 = vadd.xlane.f32.xlu0 %v1369
        %v1371 = vpop.xlane.xlu0 %1370
        %v1372 = vrcp.pop %v1371
        %v1373 = vmul.f32 %v1368, %v1372
        %1374 = vrot.lane.b32.xlu0 %v1203, 112
        %v1375 = vpop.permute.xlu0 %1374
        %v1378 = vsel %vm1205, %v1373, 0
        %1380 = vmatpush.msra.mxu0 0.0
        %1381 = vmatpush.msra.mxu0 0.0
        %1382 = vmatpush.msra.mxu0 0.0
        %1383 = vmatpush.msra.mxu0 0.0
        %1384 = vmatpush.msra.mxu0 0.0
        %1385 = vmatpush.msra.mxu0 0.0
        %1386 = vmatpush.msra.mxu0 0.0
        %1387 = vmatpush.msra.mxu0 0.0
        %1388 = vmatpush.msra.mxu0 0.0
        %1389 = vmatpush.msra.mxu0 0.0
        %1390 = vmatpush.msra.mxu0 0.0
        %1391 = vmatpush.msra.mxu0 0.0
        %1392 = vmatpush.msra.mxu0 0.0
        %1393 = vmatpush.msra.mxu0 0.0
        %1394 = vmatpush.msra.mxu0 0.0
        %1395 = vmatpush.msra.mxu0 %v1375
        %1396 = vmatmul.f32.gmra.mxu0 %v1378
        %v1397 = vpop.f32.mrf.mxu0
        %v1398 = vadd.f32 0.0, %v1397
        %1399 = vdwg.mxu0
        %1400 = vrot.lane.b32.xlu0 %v1147, 104
        %v1401 = vpop.permute.xlu0 %1400
        %1402 = vrot.lane.b32.xlu0 %v1175, 104
        %v1403 = vpop.permute.xlu0 %1402
        %v1404 = vsel %vm1205, %v1401, 0
        %v1406 = vsel %vm1205, %v1403, 0
        %1408 = vmatpush.xpose.msra.mxu0 0.0
        %1409 = vmatpush.xpose.msra.mxu0 0.0
        %1410 = vmatpush.xpose.msra.mxu0 0.0
        %1411 = vmatpush.xpose.msra.mxu0 0.0
        %1412 = vmatpush.xpose.msra.mxu0 0.0
        %1413 = vmatpush.xpose.msra.mxu0 0.0
        %1414 = vmatpush.xpose.msra.mxu0 0.0
        %1415 = vmatpush.xpose.msra.mxu0 0.0
        %1416 = vmatpush.xpose.msra.mxu0 0.0
        %1417 = vmatpush.xpose.msra.mxu0 0.0
        %1418 = vmatpush.xpose.msra.mxu0 0.0
        %1419 = vmatpush.xpose.msra.mxu0 0.0
        %1420 = vmatpush.xpose.msra.mxu0 0.0
        %1421 = vmatpush.xpose.msra.mxu0 0.0
        %1422 = vmatpush.xpose.msra.mxu0 0.0
        %1423 = vmatpush.xpose.msra.mxu0 %v1406
        %1424 = vmatmul.f32.gmra.mxu0 %v1404
        %v1425 = vpop.f32.mrf.mxu0
        %v1426 = vadd.f32 0.0, %v1425
        %1427 = vdwg.mxu0
        %v1428 = vmul.f32 %v1426, 0.35355338
        %v1429 = vsel %vm1205, %v1428, -inf
        %1430 = vmax.xlane.f32.xlu0 %v1429
        %v1431 = vpop.xlane.xlu0 %1430
        %v1432 = vsub.f32 %v1428, %v1431
        %v1433 = vmul.f32 %v1432, 1.442695
        %v1434 = vpow.pop %v1433
        %v1435 = vsel %vm1205, %v1434, 0.0
        %1436 = vadd.xlane.f32.xlu0 %v1435
        %v1437 = vpop.xlane.xlu0 %1436
        %v1438 = vrcp.pop %v1437
        %v1439 = vmul.f32 %v1434, %v1438
        %1440 = vrot.lane.b32.xlu0 %v1203, 104
        %v1441 = vpop.permute.xlu0 %1440
        %v1444 = vsel %vm1205, %v1439, 0
        %1446 = vmatpush.msra.mxu0 0.0
        %1447 = vmatpush.msra.mxu0 0.0
        %1448 = vmatpush.msra.mxu0 0.0
        %1449 = vmatpush.msra.mxu0 0.0
        %1450 = vmatpush.msra.mxu0 0.0
        %1451 = vmatpush.msra.mxu0 0.0
        %1452 = vmatpush.msra.mxu0 0.0
        %1453 = vmatpush.msra.mxu0 0.0
        %1454 = vmatpush.msra.mxu0 0.0
        %1455 = vmatpush.msra.mxu0 0.0
        %1456 = vmatpush.msra.mxu0 0.0
        %1457 = vmatpush.msra.mxu0 0.0
        %1458 = vmatpush.msra.mxu0 0.0
        %1459 = vmatpush.msra.mxu0 0.0
        %1460 = vmatpush.msra.mxu0 0.0
        %1461 = vmatpush.msra.mxu0 %v1441
        %1462 = vmatmul.f32.gmra.mxu0 %v1444
        %v1463 = vpop.f32.mrf.mxu0
        %v1464 = vadd.f32 0.0, %v1463
        %1465 = vdwg.mxu0
        %1467 = vrot.lane.b32.xlu0 %v1332, 8
        %v1468 = vpop.permute.xlu0 %1467
        %1471 = vrot.lane.b32.xlu0 %v1398, 16
        %v1472 = vpop.permute.xlu0 %1471
        %1475 = vrot.lane.b32.xlu0 %v1464, 24
        %v1476 = vpop.permute.xlu0 %1475
        %v1478 = vsel %vm1205, %v1265, %v1468
        %vm1479 = vcmask 130048
        %v1480 = vsel %vm1479, %v1478, %v1472
        %vm1481 = vcmask 195584
        %v1482 = vsel %vm1481, %v1480, %v1476
        %v1483 = vld [vmem:[%s859] sm:$0xff]
        %v1484 = vld [vmem:[%s859 + $0x8] sm:$0xff]
        %v1485 = vld [vmem:[%s859 + $0x10] sm:$0xff]
        %v1486 = vld [vmem:[%s859 + $0x18] sm:$0xff]
        %v1488 = vsel %vm1060, %v1482, 0
        %1490 = vmatpush.msra.mxu0 0.0
        %1491 = vmatpush.msra.mxu0 0.0
        %1492 = vmatpush.msra.mxu0 0.0
        %1493 = vmatpush.msra.mxu0 0.0
        %1494 = vmatpush.msra.mxu0 0.0
        %1495 = vmatpush.msra.mxu0 0.0
        %1496 = vmatpush.msra.mxu0 0.0
        %1497 = vmatpush.msra.mxu0 0.0
        %1498 = vmatpush.msra.mxu0 0.0
        %1499 = vmatpush.msra.mxu0 0.0
        %1500 = vmatpush.msra.mxu0 0.0
        %1501 = vmatpush.msra.mxu0 0.0
        %1502 = vmatpush.msra.mxu0 %v1486
        %1503 = vmatpush.msra.mxu0 %v1485
        %1504 = vmatpush.msra.mxu0 %v1484
        %1505 = vmatpush.msra.mxu0 %v1483
        %1506 = vmatmul.f32.gmra.mxu0 %v1488
        %v1507 = vpop.f32.mrf.mxu0
        %v1508 = vadd.f32 0.0, %v1507
        %1509 = vdwg.mxu0
        %v1510 = vadd.f32 %v1057, %v1508
        %v1511 = vld [vmem:[%s868] sm:$0x1]
        %v1513 = vperm.slane %v1511, 0
        %v1515 = vadd.f32 %v1510, %v1513
        %v1516 = vld [vmem:[%s1041] sm:$0x1]
        %v1517 = vld [vmem:[%s1044] sm:$0x1]
        %v1518 = vsel %vm1060, %v1515, 0.0
        %1519 = vadd.xlane.f32.xlu0 %v1518
        %v1520 = vpop.xlane.xlu0 %1519
        %v1521 = vmul.f32 %v1520, %v1070
        %v1522 = vmul.f32 %v1515, %v1515
        %v1523 = vsel %vm1060, %v1522, 0.0
        %1524 = vadd.xlane.f32.xlu0 %v1523
        %v1525 = vpop.xlane.xlu0 %1524
        %v1526 = vmul.f32 %v1525, %v1070
        %v1527 = vmul.f32 %v1521, %v1521
        %v1528 = vsub.f32 %v1526, %v1527
        %v1529 = vmul.f32 %v1528, 1.032258
        %v1530 = vmax.f32 %v1529, 0.0
        %v1531 = vrsqrt.pop %v1530
        %v1532 = vmul.f32 %v1531, %v1530
        %v1533 = vmul.f32 %v1532, %v1531
        %v1534 = vmul.f32 0.5, %v1533
        %v1535 = vsub.f32 1.5, %v1534
        %v1536 = vmul.f32 %v1531, %v1535
        %v1537 = vmul.f32 %v1530, %v1536
        %vm1538 = vcmp.eq.f32.partialorder %v1530, inf
        %v1539 = vsel %vm1538, %v1530, %v1537
        %vm1540 = vcmp.eq.f32.partialorder %v1530, 0.0
        %v1541 = vand.u32 %v1530, 2147483648
        %v1542 = vsel %vm1540, %v1541, %v1539
        %v1543 = vsub.f32 %v1515, %v1521
        %v1544 = vadd.f32 %v1542, 1e-06
        %v1545 = vrcp.pop %v1544
        %v1546 = vmul.f32 %v1544, %v1545
        %v1547 = vsub.f32 1.0, %v1546
        %v1548 = vmul.f32 %v1545, %v1547
        %v1549 = vadd.f32 %v1545, %v1548
        %vm1550 = vweird.f32 %v1544
        %vm1551 = vweird.f32 %v1545
        %vm1552 = vmor %vm1550, %vm1551
        %v1553 = vsel %vm1552, %v1545, %v1549
        %v1554 = vand.u32 2147483647, %v1544
        %vm1555 = vcmp.eq.f32.partialorder %v1554, 8.507059e+37
        %v1556 = vand.u32 %v1544, 2147483648
        %v1557 = vor.u32 1.1754944e-38, %v1556
        %v1558 = vsel %vm1555, %v1557, %v1553
        %v1559 = vmul.f32 %v1543, %v1558
        %v1561 = vperm.slane %v1516, 0
        %v1563 = vmul.f32 %v1561, %v1559
        %v1565 = vperm.slane %v1517, 0
        %v1567 = vadd.f32 %v1563, %v1565
        %v1568 = vld [vmem:[%s878] sm:$0xff]
        %v1569 = vld [vmem:[%s878 + $0x8] sm:$0xff]
        %v1570 = vld [vmem:[%s878 + $0x10] sm:$0xff]
        %v1571 = vld [vmem:[%s878 + $0x18] sm:$0xff]
        %v1572 = vld [vmem:[%s887] sm:$0x1]
        %v1574 = vperm.slane %v1572, 0
        %v1577 = vsel %vm1060, %v1567, 0
        %1579 = vmatpush.msra.mxu0 0.0
        %1580 = vmatpush.msra.mxu0 0.0
        %1581 = vmatpush.msra.mxu0 0.0
        %1582 = vmatpush.msra.mxu0 0.0
        %1583 = vmatpush.msra.mxu0 0.0
        %1584 = vmatpush.msra.mxu0 0.0
        %1585 = vmatpush.msra.mxu0 0.0
        %1586 = vmatpush.msra.mxu0 0.0
        %1587 = vmatpush.msra.mxu0 0.0
        %1588 = vmatpush.msra.mxu0 0.0
        %1589 = vmatpush.msra.mxu0 0.0
        %1590 = vmatpush.msra.mxu0 0.0
        %1591 = vmatpush.msra.mxu0 %v1571
        %1592 = vmatpush.msra.mxu0 %v1570
        %1593 = vmatpush.msra.mxu0 %v1569
        %1594 = vmatpush.msra.mxu0 %v1568
        %1595 = vmatmul.f32.gmra.mxu0 %v1577
        %v1596 = vpop.f32.mrf.mxu0
        %v1597 = vadd.f32 %v1574, %v1596
        %1598 = vdwg.mxu0
        %v1599 = vmax.f32 %v1597, 0.0
        %v1600 = vld [vmem:[%s1049] sm:$0xff]
        %v1601 = vld [vmem:[%s1049 + $0x8] sm:$0xff]
        %v1602 = vld [vmem:[%s1049 + $0x10] sm:$0xff]
        %v1603 = vld [vmem:[%s1049 + $0x18] sm:$0xff]
        %v1604 = vld [vmem:[%s1049 + $0x20] sm:$0xff]
        %v1605 = vld [vmem:[%s1049 + $0x28] sm:$0xff]
        %v1606 = vld [vmem:[%s1049 + $0x30] sm:$0xff]
        %v1607 = vld [vmem:[%s1049 + $0x38] sm:$0xff]
        %vm1608 = vcmask 523264
        %v1610 = vsel %vm1608, %v1599, 0
        %1612 = vmatpush.msra.mxu0 0.0
        %1613 = vmatpush.msra.mxu0 0.0
        %1614 = vmatpush.msra.mxu0 0.0
        %1615 = vmatpush.msra.mxu0 0.0
        %1616 = vmatpush.msra.mxu0 0.0
        %1617 = vmatpush.msra.mxu0 0.0
        %1618 = vmatpush.msra.mxu0 0.0
        %1619 = vmatpush.msra.mxu0 0.0
        %1620 = vmatpush.msra.mxu0 %v1607
        %1621 = vmatpush.msra.mxu0 %v1606
        %1622 = vmatpush.msra.mxu0 %v1605
        %1623 = vmatpush.msra.mxu0 %v1604
        %1624 = vmatpush.msra.mxu0 %v1603
        %1625 = vmatpush.msra.mxu0 %v1602
        %1626 = vmatpush.msra.mxu0 %v1601
        %1627 = vmatpush.msra.mxu0 %v1600
        %1628 = vmatmul.f32.gmra.mxu0 %v1610
        %v1629 = vpop.f32.mrf.mxu0
        %v1630 = vadd.f32 0.0, %v1629
        %1631 = vdwg.mxu0
        %v1632 = vadd.f32 %v1515, %v1630
        %v1633 = vld [vmem:[%s896] sm:$0x1]
        %v1635 = vperm.slane %v1633, 0
        %v1637 = vadd.f32 %v1632, %v1635
        %1638 = vst.msk [vmem:[#allocation2] sm:$0xff] %vm1060, %v1637
        %p1639 = scmp.eq.s32.totalorder %s53, 1
        // Predicated region
        $region137: #{encoder_forward.1} parent=95 // pred_check
          %p1640 = pneg %p1639
        $region138: #{encoder_forward.1} parent=95 // pred_check_branch
          %1642 = sbr.rel (%p1640) target = $region140
        $region139: #{encoder_forward.1} parent=95 // pred_region
          %v1643 = vld [vmem:[%s17] sm:$0x1]
          %v1644 = vld [vmem:[%s18] sm:$0x1]
          %v1645 = vsel %vm1060, %v1637, 0.0
          %1646 = vadd.xlane.f32.xlu0 %v1645
          %v1647 = vpop.xlane.xlu0 %1646
          %v1648 = vmul.f32 %v1647, %v1070
          %v1649 = vmul.f32 %v1637, %v1637
          %v1650 = vsel %vm1060, %v1649, 0.0
          %1651 = vadd.xlane.f32.xlu0 %v1650
          %v1652 = vpop.xlane.xlu0 %1651
          %v1653 = vmul.f32 %v1652, %v1070
          %v1654 = vmul.f32 %v1648, %v1648
          %v1655 = vsub.f32 %v1653, %v1654
          %v1656 = vmul.f32 %v1655, 1.032258
          %v1657 = vmax.f32 %v1656, 0.0
          %v1658 = vrsqrt.pop %v1657
          %v1659 = vmul.f32 %v1658, %v1657
          %v1660 = vmul.f32 %v1659, %v1658
          %v1661 = vmul.f32 0.5, %v1660
          %v1662 = vsub.f32 1.5, %v1661
          %v1663 = vmul.f32 %v1658, %v1662
          %v1664 = vmul.f32 %v1657, %v1663
          %vm1665 = vcmp.eq.f32.partialorder %v1657, inf
          %v1666 = vsel %vm1665, %v1657, %v1664
          %vm1667 = vcmp.eq.f32.partialorder %v1657, 0.0
          %v1668 = vand.u32 %v1657, 2147483648
          %v1669 = vsel %vm1667, %v1668, %v1666
          %v1670 = vsub.f32 %v1637, %v1648
          %v1671 = vadd.f32 %v1669, 1e-06
          %v1672 = vrcp.pop %v1671
          %v1673 = vmul.f32 %v1671, %v1672
          %v1674 = vsub.f32 1.0, %v1673
          %v1675 = vmul.f32 %v1672, %v1674
          %v1676 = vadd.f32 %v1672, %v1675
          %vm1677 = vweird.f32 %v1671
          %vm1678 = vweird.f32 %v1672
          %vm1679 = vmor %vm1677, %vm1678
          %v1680 = vsel %vm1679, %v1672, %v1676
          %v1681 = vand.u32 2147483647, %v1671
          %vm1682 = vcmp.eq.f32.partialorder %v1681, 8.507059e+37
          %v1683 = vand.u32 %v1671, 2147483648
          %v1684 = vor.u32 1.1754944e-38, %v1683
          %v1685 = vsel %vm1682, %v1684, %v1680
          %v1686 = vmul.f32 %v1670, %v1685
          %v1688 = vperm.slane %v1643, 0
          %v1690 = vmul.f32 %v1688, %v1686
          %v1692 = vperm.slane %v1644, 0
          %v1694 = vadd.f32 %v1690, %v1692
          %1695 = vst.msk [vmem:[%s1017] sm:$0xff] %vm1060, %v1694
        $region140: #{encoder_forward.1} parent=95 // pred_fallthru
          _
        %s1696 = sand.u32 %s552, 1
        %s1697 = scalar_lea.sflag [#allocation5], %s1696
        %s1698 = sand.u32 %s552, 1
        %s1699 = smul.addr %s1698, 8
        %s1700 = scalar_lea.vmem [#allocation18], %s1699
        // Predicated region
        $region141: #{encoder_forward.1} parent=95 // pred_check
          %p1701 = pneg %p562
        $region142: #{encoder_forward.1} parent=95 // pred_check_branch
          %1703 = sbr.rel (%p1701) target = $region144
        $region143: #{encoder_forward.1} parent=95 // pred_region
          %1705 = vsyncadd %s1697, 0
          %s1706 = smul.addr %s52, 8
          %s1707 = scalar_lea.hbm %s19, %s1706
          %s1709 = sshll.u32 %s1700, 4
          %s1710 = int_to_ptr.vmem [resolvable:$true] %s1709
          %s1711 = sshll.u32 %s1707, 4
          %s1712 = int_to_ptr.hbm [resolvable:$true] %s1711
          %1714 = dma.vmem_to_hbm [thread:$0]  %s1710, 128, %s1712, %s1697
        $region144: #{encoder_forward.1} parent=95 // pred_fallthru
          _
      $region96: #{encoder_forward.1} parent=5 // pred_fallthru
        _
      %p1715 = scmp.le.s32.totalorder 2, %s43
      // Predicated region
      $region145: #{encoder_forward.1} parent=5 // pred_check
        %p1716 = pneg %p1715
      $region146: #{encoder_forward.1} parent=5 // pred_check_branch
        %1718 = sbr.rel (%p1716) target = $region148
      $region147: #{encoder_forward.1} parent=5 // pred_region
        %s1719 = ssub.s32 %s43, 2
        // Predicated region
        $region149: #{encoder_forward.1} parent=147 // pred_check
          %p1720 = pneg %p568
        $region150: #{encoder_forward.1} parent=147 // pred_check_branch
          %1722 = sbr.rel (%p1720) target = $region152
        $region151: #{encoder_forward.1} parent=147 // pred_region
          %s1723 = sand.u32 %s553, 1
          %s1724 = scalar_lea.sflag [#allocation5], %s1723
          %s1725 = sand.u32 %s553, 1
          %s1726 = smul.addr %s1725, 8
          %s1727 = scalar_lea.vmem [#allocation18], %s1726
          %1729 = dma.done %s1724, 128
        $region152: #{encoder_forward.1} parent=147 // pred_fallthru
          _
      $region148: #{encoder_forward.1} parent=5 // pred_fallthru
        _
    $region6: #{encoder_forward.1} parent=1 // loop_footer
      %s47 = sadd.s32 1, %s43
    $region7: #{encoder_forward.1} parent=1 // loop_footer_branch
      %42 = sbr.rel target = $region3
    $region8: #{encoder_forward.1} parent=1 // loop_exit
      _
    %1730 = vsyncpa [#allocation4], 1
    %s1731 = scalar_lea.sflag [#allocation4], 1
    %1732 = vsyncpa %s1731, 1
    %1733 = vsyncpa [#allocation7], 1
    %s1734 = scalar_lea.sflag [#allocation7], 1
    %1735 = vsyncpa %s1734, 1
    %1736 = vsyncpa [#allocation10], 1
    %s1737 = scalar_lea.sflag [#allocation10], 1
    %1738 = vsyncpa %s1737, 1
    %1739 = vsyncpa [#allocation13], 1
    %s1740 = scalar_lea.sflag [#allocation13], 1
    %1741 = vsyncpa %s1740, 1
    %1742 = vsyncpa [#allocation16], 1
    %s1743 = scalar_lea.sflag [#allocation16], 1
    %1744 = vsyncpa %s1743, 1
    %1745 = vsyncpa [#allocation5], 1
    %s1746 = scalar_lea.sflag [#allocation5], 1
    %1747 = vsyncpa %s1746, 1

</llo_original>
